<compile_context>
chip_gen: v7x
topology: tpu7x:2x2x1
jax: 0.10.0
libtpu: 0.0.40
codegen_flags: <defaults>
</compile_context>

<pallas_src>
import math

import jax
import jax.numpy as jnp
from jax import lax
from jax.experimental import pallas as pl
from jax.experimental.pallas import tpu as pltpu


def _round_up(x, m):
    return ((x + m - 1) // m) * m


def _make_fused_kernel(num_hidden_layers):
    """Build the kernel body for a net with `num_hidden_layers` hidden->hidden layers."""

    def kernel(phase_ref, s_ref,
               w1_ref, b1_ref,
               w2f_ref, wm_s_ref, b0_ref,
               *args):
        # args = [wh_0, bh_0, ..., wh_{H-1}, bh_{H-1}, wout, bout, o_ref]
        hidden = args[: 2 * num_hidden_layers]
        wout_ref, bout_ref, o_ref = args[2 * num_hidden_layers:]
        f32 = jnp.float32
        cdt = w1_ref.dtype            # bf16 compute dtype for MXU operands

        # ---- SinusoidalPosEmb, single-EUP form: [sin(p), cos(p)] == sin(phase_full)
        emb = jnp.sin(phase_ref[...])                       # (tb, time_dim) f32

        # ---- time_embed Linear1 + ReLU (one K=time_dim MXU push) ----
        h = jnp.dot(emb.astype(cdt), w1_ref[...],
                    preferred_element_type=f32) + b1_ref[...]
        h = jnp.maximum(h, 0.0)

        # ---- time_embed Linear2 folded into MLP layer 0 (exact algebra):
        #      z0 = relu(state @ Wm0_s + h @ (te_w2 @ Wm0_t) + (b0 + te_b2 @ Wm0_t))
        z = (jnp.dot(s_ref[...], wm_s_ref[...], preferred_element_type=f32)
             + jnp.dot(h.astype(cdt), w2f_ref[...], preferred_element_type=f32)
             + b0_ref[...])
        z = jnp.maximum(z, 0.0)

        # ---- hidden -> hidden layers (hidden_depth - 1 of them) ----
        for li in range(num_hidden_layers):
            w_ref = hidden[2 * li]
            b_ref = hidden[2 * li + 1]
            z = jnp.dot(z.astype(cdt), w_ref[...],
                        preferred_element_type=f32) + b_ref[...]
            z = jnp.maximum(z, 0.0)

        # ---- output layer (out_pad % 128 == 0 -> lane-dense unmasked stores) ----
        o_ref[...] = (jnp.dot(z.astype(cdt), wout_ref[...],
                              preferred_element_type=f32)
                      + bout_ref[...]).astype(o_ref.dtype)

    return kernel


def nabla_mu_with_time_embed(perturbed_next_state, timestep, params, *, tb=None):
    """Fused forward of NablaMuWithTimeEmbed.

    perturbed_next_state : (B, state_dim)
    timestep             : (B,)
    params:
      te_w1 (time_dim, 2*time_dim), te_b1 (2*time_dim,)
      te_w2 (2*time_dim, time_dim), te_b2 (time_dim,)
      mlp_w [ (state_dim+time_dim, hidden), (hidden, hidden)*(depth-1), (hidden, out) ]
      mlp_b matching biases
    """
    f32, bf16 = jnp.float32, jnp.bfloat16
    state = perturbed_next_state.astype(f32)
    B, state_dim = state.shape

    te_w1 = params["te_w1"].astype(f32)
    te_b1 = params["te_b1"].astype(f32)
    te_w2 = params["te_w2"].astype(f32)
    te_b2 = params["te_b2"].astype(f32)
    mlp_w = [w.astype(f32) for w in params["mlp_w"]]
    mlp_b = [b.astype(f32) for b in params["mlp_b"]]

    time_dim = te_w1.shape[0]
    assert time_dim % 2 == 0 and time_dim >= 4, "time_dim must be even and >= 4"
    half_dim = time_dim // 2
    hidden_dim = mlp_w[0].shape[1]
    out_dim = mlp_w[-1].shape[1]
    num_hidden_layers = len(mlp_w) - 2
    assert num_hidden_layers >= 0

    # ---- batch tiling: few fat MXU-native steps, sublane-aligned, zero-padded ----
    if tb is None:
        tb = 256                     # MXU-native M on v6e/v7x; 2 full passes on v5e
    if B <= tb:
        tb = _round_up(B, 8)         # single grid step for small batches
    assert tb % 8 == 0
    B_pad = _round_up(B, tb)
    grid = (B_pad // tb,)

    # ---- lane-dense output (pad feature dim to a multiple of 128) ----
    out_pad = _round_up(out_dim, 128)

    # ---- hoisted constants & layout plumbing (no in-kernel concat anywhere) ----
    emb_scale = math.log(10000.0) / (half_dim - 1)
    freqs = jnp.exp(jnp.arange(half_dim, dtype=f32) * -emb_scale)
    freqs_full = jnp.concatenate([freqs, freqs]).reshape(1, time_dim)
    offset = jnp.concatenate(
        [jnp.zeros((half_dim,), f32),
         jnp.full((half_dim,), math.pi / 2.0, dtype=f32)]).reshape(1, time_dim)
    # sin(phase_full) == [sin(t*f), cos(t*f)]   (cos x = sin(x + pi/2))
    phase = timestep.reshape(B, 1).astype(f32) * freqs_full + offset   # (B, time_dim)

    wm0 = mlp_w[0]
    wm0_state = wm0[:state_dim, :]
    wm0_time = wm0[state_dim:, :]
    hp = lax.Precision.HIGHEST
    # Exact fold of the 2nd time-embed linear into MLP layer 0 (no nonlinearity between).
    w2_fold = jnp.dot(te_w2, wm0_time, precision=hp)             # (2*time_dim, hidden)
    b0_fold = mlp_b[0] + jnp.dot(te_b2, wm0_time, precision=hp)  # (hidden,)

    wout = mlp_w[-1]
    bout = mlp_b[-1]
    if out_pad != out_dim:
        wout = jnp.pad(wout, ((0, 0), (0, out_pad - out_dim)))
        bout = jnp.pad(bout, ((0, out_pad - out_dim),))

    if B_pad != B:
        phase = jnp.pad(phase, ((0, B_pad - B), (0, 0)))
        state = jnp.pad(state, ((0, B_pad - B), (0, 0)))

    state_bf = state.astype(bf16)    # bf16 dot operand; halves its DMA bytes

    def row(b):
        return b.reshape(1, -1)

    weight_inputs = [
        te_w1.astype(bf16), row(te_b1),
        w2_fold.astype(bf16), wm0_state.astype(bf16), row(b0_fold),
    ]
    for li in range(num_hidden_layers):
        weight_inputs += [mlp_w[1 + li].astype(bf16), row(mlp_b[1 + li])]
    weight_inputs += [wout.astype(bf16), row(bout)]

    def full_spec(a):
        # Whole (small) weight resident per grid step; constant index_map => no re-DMA.
        # TODO(synk): if hidden_dim is ever scaled into the multi-MB range, add
        # pipeline_mode=pl.Buffered(1) here and an explicit vmem_limit_bytes
        # (only matters on v7x's 64 MiB VMEM); irrelevant at these sizes.
        return pl.BlockSpec(a.shape, lambda i: (0, 0))

    in_specs = (
        [pl.BlockSpec((tb, time_dim), lambda i: (i, 0)),    # phase tile (f32)
         pl.BlockSpec((tb, state_dim), lambda i: (i, 0))]   # state tile (bf16)
        + [full_spec(a) for a in weight_inputs]
    )

    # Advisory cost estimate for XLA's scheduler around the custom call.
    flops = 2 * B_pad * (
        time_dim * (2 * time_dim)
        + (2 * time_dim) * hidden_dim
        + state_dim * hidden_dim
        + num_hidden_layers * hidden_dim * hidden_dim
        + hidden_dim * out_pad)
    bytes_accessed = (
        phase.size * 4 + state_bf.size * 2
        + sum(int(a.size) * a.dtype.itemsize for a in weight_inputs)
        + B_pad * out_pad * 4)
    cost = pl.CostEstimate(flops=flops,
                           transcendentals=B_pad * time_dim,
                           bytes_accessed=bytes_accessed)

    kernel = _make_fused_kernel(num_hidden_layers)

    out = pl.pallas_call(
        kernel,
        out_shape=jax.ShapeDtypeStruct((B_pad, out_pad), f32),
        grid=grid,
        in_specs=in_specs,
        out_specs=pl.BlockSpec((tb, out_pad), lambda i: (i, 0)),
        compiler_params=pltpu.CompilerParams(
            dimension_semantics=("parallel",)),
        cost_estimate=cost,
    )(phase, state_bf, *weight_inputs)

    if B_pad != B or out_pad != out_dim:
        out = out[:B, :out_dim]
    return out


def nabla_mu_ref(state, timestep, params):
    """Pure-JAX reference mirroring the PyTorch forward (HIGHEST-precision dots)."""
    hp = lax.Precision.HIGHEST
    te_w1, te_b1 = params["te_w1"], params["te_b1"]
    te_w2, te_b2 = params["te_w2"], params["te_b2"]
    time_dim = te_w1.shape[0]
    half_dim = time_dim // 2

    emb = math.log(10000.0) / (half_dim - 1)
    emb = jnp.exp(jnp.arange(half_dim, dtype=jnp.float32) * -emb)
    emb = timestep[:, None].astype(jnp.float32) * emb[None, :]
    emb = jnp.concatenate([jnp.sin(emb), jnp.cos(emb)], axis=-1)

    h = jnp.maximum(jnp.dot(emb, te_w1, precision=hp) + te_b1, 0.0)
    t_emb = jnp.dot(h, te_w2, precision=hp) + te_b2

    # TODO(synk): original torch.concat([state, o]) defaults to dim=0, which is
    # shape-inconsistent with the MLP's declared input (state_dim + time_dim);
    # the intended feature-dim concat is implemented here (and fused in-kernel).
    z = jnp.concatenate([state, t_emb], axis=-1)

    ws, bs = params["mlp_w"], params["mlp_b"]
    for w, b in zip(ws[:-1], bs[:-1]):
        z = jnp.maximum(jnp.dot(z, w, precision=hp) + b, 0.0)
    return jnp.dot(z, ws[-1], precision=hp) + bs[-1]


if __name__ == "__main__":
    key = jax.random.PRNGKey(0)
    B = 64
    state_dim = 16
    feature_dim = 8          # out_dim = feature_dim * state_dim = 128 (lane-dense)
    time_dim = 32
    hidden_dim = 128
    hidden_depth = 2
    out_dim = feature_dim * state_dim

    keys = jax.random.split(key, 16)

    def init_w(k, shape):
        return jax.random.normal(k, shape, dtype=jnp.float32) / math.sqrt(shape[0])

    params = {
        "te_w1": init_w(keys[0], (time_dim, 2 * time_dim)),
        "te_b1": jax.random.normal(keys[1], (2 * time_dim,), dtype=jnp.float32) * 0.01,
        "te_w2": init_w(keys[2], (2 * time_dim, time_dim)),
        "te_b2": jax.random.normal(keys[3], (time_dim,), dtype=jnp.float32) * 0.01,
    }
    mlp_dims = [state_dim + time_dim] + [hidden_dim] * hidden_depth + [out_dim]
    mlp_w, mlp_b = [], []
    for li in range(len(mlp_dims) - 1):
        mlp_w.append(init_w(keys[4 + 2 * li], (mlp_dims[li], mlp_dims[li + 1])))
        mlp_b.append(
            jax.random.normal(keys[5 + 2 * li], (mlp_dims[li + 1],), dtype=jnp.float32) * 0.01
        )
    params["mlp_w"] = mlp_w
    params["mlp_b"] = mlp_b

    state = jax.random.normal(keys[12], (B, state_dim), dtype=jnp.float32)
    timestep = jax.random.uniform(
        keys[13], (B,), dtype=jnp.float32, minval=0.0, maxval=100.0
    )

    out = nabla_mu_with_time_embed(state, timestep, params)
    out = jax.block_until_ready(out)

    ref = nabla_mu_ref(state, timestep, params)
    assert out.shape == (B, out_dim), out.shape
    err = float(jnp.max(jnp.abs(out - ref)))
    scale = float(jnp.max(jnp.abs(ref))) + 1e-6
    # Tolerance budgets for bf16 weights / dot operands vs the HIGHEST-precision
    # f32 reference (review: 3e-2 already covers this).
    assert err / scale < 3e-2, (err, scale)
    print("KERNEL_OK")
</pallas_src>

<mosaic_0001>
module attributes {stable_mosaic.version = 11 : i64} {
  func.func @kernel(%arg0: i32, %arg1: memref<64x32xf32, #tpu.memory_space<vmem>>, %arg2: memref<64x16xbf16, #tpu.memory_space<vmem>>, %arg3: memref<32x64xbf16, #tpu.memory_space<vmem>>, %arg4: memref<1x64xf32, #tpu.memory_space<vmem>>, %arg5: memref<64x128xbf16, #tpu.memory_space<vmem>>, %arg6: memref<16x128xbf16, #tpu.memory_space<vmem>>, %arg7: memref<1x128xf32, #tpu.memory_space<vmem>>, %arg8: memref<128x128xbf16, #tpu.memory_space<vmem>>, %arg9: memref<1x128xf32, #tpu.memory_space<vmem>>, %arg10: memref<128x128xbf16, #tpu.memory_space<vmem>>, %arg11: memref<1x128xf32, #tpu.memory_space<vmem>>, %arg12: memref<64x128xf32, #tpu.memory_space<vmem>>) attributes {dimension_semantics = [#tpu.dimension_semantics<parallel>], iteration_bounds = array<i64: 1>, scalar_prefetch = 0 : i64, scratch_operands = 0 : i64, tpu.core_type = #tpu.core_type<tc>, window_params = [{transform_indices = @transform_0, window_bounds = array<i64: 64, 32>}, {transform_indices = @transform_1, window_bounds = array<i64: 64, 16>}, {pipeline_mode = #tpu.pipeline_mode<synchronous>, transform_indices = @transform_2, window_bounds = array<i64: 32, 64>}, {pipeline_mode = #tpu.pipeline_mode<synchronous>, transform_indices = @transform_3, window_bounds = array<i64: 1, 64>}, {pipeline_mode = #tpu.pipeline_mode<synchronous>, transform_indices = @transform_4, window_bounds = array<i64: 64, 128>}, {pipeline_mode = #tpu.pipeline_mode<synchronous>, transform_indices = @transform_5, window_bounds = array<i64: 16, 128>}, {pipeline_mode = #tpu.pipeline_mode<synchronous>, transform_indices = @transform_6, window_bounds = array<i64: 1, 128>}, {pipeline_mode = #tpu.pipeline_mode<synchronous>, transform_indices = @transform_7, window_bounds = array<i64: 128, 128>}, {pipeline_mode = #tpu.pipeline_mode<synchronous>, transform_indices = @transform_8, window_bounds = array<i64: 1, 128>}, {pipeline_mode = #tpu.pipeline_mode<synchronous>, transform_indices = @transform_9, window_bounds = array<i64: 128, 128>}, {pipeline_mode = #tpu.pipeline_mode<synchronous>, transform_indices = @transform_10, window_bounds = array<i64: 1, 128>}, {transform_indices = @transform_11, window_bounds = array<i64: 64, 128>}]} {
    %c0 = arith.constant 0 : index
    %c0_0 = arith.constant 0 : index
    %0 = vector.load %arg1[%c0, %c0_0] : memref<64x32xf32, #tpu.memory_space<vmem>>, vector<64x32xf32>
    %1 = math.sin %0 : vector<64x32xf32>
    %2 = arith.truncf %1 : vector<64x32xf32> to vector<64x32xbf16>
    %c0_1 = arith.constant 0 : index
    %c0_2 = arith.constant 0 : index
    %3 = vector.load %arg3[%c0_1, %c0_2] : memref<32x64xbf16, #tpu.memory_space<vmem>>, vector<32x64xbf16>
    %cst = arith.constant dense<0.000000e+00> : vector<64x64xf32>
    %4 = tpu.matmul %2, %3, %cst {dimension_numbers = #tpu.dot_dimension_numbers<[1], [0], [0], [1], [0, 0, 1, 1], [], []>} : vector<64x32xbf16>, vector<32x64xbf16>, vector<64x64xf32> -> vector<64x64xf32>
    %c0_3 = arith.constant 0 : index
    %c0_4 = arith.constant 0 : index
    %5 = vector.load %arg4[%c0_3, %c0_4] : memref<1x64xf32, #tpu.memory_space<vmem>>, vector<1x64xf32>
    %6 = vector.broadcast %5 : vector<1x64xf32> to vector<64x64xf32>
    %7 = arith.addf %4, %6 : vector<64x64xf32>
    %cst_5 = arith.constant 0.000000e+00 : f32
    %8 = vector.broadcast %cst_5 : f32 to vector<64x64xf32>
    %9 = arith.maximumf %7, %8 : vector<64x64xf32>
    %c0_6 = arith.constant 0 : index
    %c0_7 = arith.constant 0 : index
    %10 = vector.load %arg2[%c0_6, %c0_7] : memref<64x16xbf16, #tpu.memory_space<vmem>>, vector<64x16xbf16>
    %c0_8 = arith.constant 0 : index
    %c0_9 = arith.constant 0 : index
    %11 = vector.load %arg6[%c0_8, %c0_9] : memref<16x128xbf16, #tpu.memory_space<vmem>>, vector<16x128xbf16>
    %cst_10 = arith.constant dense<0.000000e+00> : vector<64x128xf32>
    %12 = tpu.matmul %10, %11, %cst_10 {dimension_numbers = #tpu.dot_dimension_numbers<[1], [0], [0], [1], [0, 0, 1, 1], [], []>} : vector<64x16xbf16>, vector<16x128xbf16>, vector<64x128xf32> -> vector<64x128xf32>
    %13 = arith.truncf %9 : vector<64x64xf32> to vector<64x64xbf16>
    %c0_11 = arith.constant 0 : index
    %c0_12 = arith.constant 0 : index
    %14 = vector.load %arg5[%c0_11, %c0_12] : memref<64x128xbf16, #tpu.memory_space<vmem>>, vector<64x128xbf16>
    %cst_13 = arith.constant dense<0.000000e+00> : vector<64x128xf32>
    %15 = tpu.matmul %13, %14, %cst_13 {dimension_numbers = #tpu.dot_dimension_numbers<[1], [0], [0], [1], [0, 0, 1, 1], [], []>} : vector<64x64xbf16>, vector<64x128xbf16>, vector<64x128xf32> -> vector<64x128xf32>
    %16 = arith.addf %12, %15 : vector<64x128xf32>
    %c0_14 = arith.constant 0 : index
    %c0_15 = arith.constant 0 : index
    %17 = vector.load %arg7[%c0_14, %c0_15] : memref<1x128xf32, #tpu.memory_space<vmem>>, vector<1x128xf32>
    %18 = vector.broadcast %17 : vector<1x128xf32> to vector<64x128xf32>
    %19 = arith.addf %16, %18 : vector<64x128xf32>
    %cst_16 = arith.constant 0.000000e+00 : f32
    %20 = vector.broadcast %cst_16 : f32 to vector<64x128xf32>
    %21 = arith.maximumf %19, %20 : vector<64x128xf32>
    %22 = arith.truncf %21 : vector<64x128xf32> to vector<64x128xbf16>
    %c0_17 = arith.constant 0 : index
    %c0_18 = arith.constant 0 : index
    %23 = vector.load %arg8[%c0_17, %c0_18] : memref<128x128xbf16, #tpu.memory_space<vmem>>, vector<128x128xbf16>
    %cst_19 = arith.constant dense<0.000000e+00> : vector<64x128xf32>
    %24 = tpu.matmul %22, %23, %cst_19 {dimension_numbers = #tpu.dot_dimension_numbers<[1], [0], [0], [1], [0, 0, 1, 1], [], []>} : vector<64x128xbf16>, vector<128x128xbf16>, vector<64x128xf32> -> vector<64x128xf32>
    %c0_20 = arith.constant 0 : index
    %c0_21 = arith.constant 0 : index
    %25 = vector.load %arg9[%c0_20, %c0_21] : memref<1x128xf32, #tpu.memory_space<vmem>>, vector<1x128xf32>
    %26 = vector.broadcast %25 : vector<1x128xf32> to vector<64x128xf32>
    %27 = arith.addf %24, %26 : vector<64x128xf32>
    %cst_22 = arith.constant 0.000000e+00 : f32
    %28 = vector.broadcast %cst_22 : f32 to vector<64x128xf32>
    %29 = arith.maximumf %27, %28 : vector<64x128xf32>
    %30 = arith.truncf %29 : vector<64x128xf32> to vector<64x128xbf16>
    %c0_23 = arith.constant 0 : index
    %c0_24 = arith.constant 0 : index
    %31 = vector.load %arg10[%c0_23, %c0_24] : memref<128x128xbf16, #tpu.memory_space<vmem>>, vector<128x128xbf16>
    %cst_25 = arith.constant dense<0.000000e+00> : vector<64x128xf32>
    %32 = tpu.matmul %30, %31, %cst_25 {dimension_numbers = #tpu.dot_dimension_numbers<[1], [0], [0], [1], [0, 0, 1, 1], [], []>} : vector<64x128xbf16>, vector<128x128xbf16>, vector<64x128xf32> -> vector<64x128xf32>
    %c0_26 = arith.constant 0 : index
    %c0_27 = arith.constant 0 : index
    %33 = vector.load %arg11[%c0_26, %c0_27] : memref<1x128xf32, #tpu.memory_space<vmem>>, vector<1x128xf32>
    %34 = vector.broadcast %33 : vector<1x128xf32> to vector<64x128xf32>
    %35 = arith.addf %32, %34 : vector<64x128xf32>
    %c0_28 = arith.constant 0 : index
    %c0_29 = arith.constant 0 : index
    %36 = vector.load %arg12[%c0_28, %c0_29] : memref<64x128xf32, #tpu.memory_space<vmem>>, vector<64x128xf32>
    tpu.vector_store %arg12[%c0_28, %c0_29], %35 {strides = array<i32>} : memref<64x128xf32, #tpu.memory_space<vmem>>, vector<64x128xf32>,
    return
  }
  func.func @transform_0(%arg0: i32) -> (i32, i32) {
    %c0_i32 = arith.constant 0 : i32
    %c0_i32_0 = arith.constant 0 : i32
    return %arg0, %c0_i32 : i32, i32
  }
  func.func @transform_1(%arg0: i32) -> (i32, i32) {
    %c0_i32 = arith.constant 0 : i32
    %c0_i32_0 = arith.constant 0 : i32
    return %arg0, %c0_i32 : i32, i32
  }
  func.func @transform_2(%arg0: i32) -> (i32, i32) {
    %c0_i32 = arith.constant 0 : i32
    %c0_i32_0 = arith.constant 0 : i32
    %c0_i32_1 = arith.constant 0 : i32
    return %c0_i32, %c0_i32_0 : i32, i32
  }
  func.func @transform_3(%arg0: i32) -> (i32, i32) {
    %c0_i32 = arith.constant 0 : i32
    %c0_i32_0 = arith.constant 0 : i32
    %c0_i32_1 = arith.constant 0 : i32
    return %c0_i32, %c0_i32_0 : i32, i32
  }
  func.func @transform_4(%arg0: i32) -> (i32, i32) {
    %c0_i32 = arith.constant 0 : i32
    %c0_i32_0 = arith.constant 0 : i32
    %c0_i32_1 = arith.constant 0 : i32
    return %c0_i32, %c0_i32_0 : i32, i32
  }
  func.func @transform_5(%arg0: i32) -> (i32, i32) {
    %c0_i32 = arith.constant 0 : i32
    %c0_i32_0 = arith.constant 0 : i32
    %c0_i32_1 = arith.constant 0 : i32
    return %c0_i32, %c0_i32_0 : i32, i32
  }
  func.func @transform_6(%arg0: i32) -> (i32, i32) {
    %c0_i32 = arith.constant 0 : i32
    %c0_i32_0 = arith.constant 0 : i32
    %c0_i32_1 = arith.constant 0 : i32
    return %c0_i32, %c0_i32_0 : i32, i32
  }
  func.func @transform_7(%arg0: i32) -> (i32, i32) {
    %c0_i32 = arith.constant 0 : i32
    %c0_i32_0 = arith.constant 0 : i32
    %c0_i32_1 = arith.constant 0 : i32
    return %c0_i32, %c0_i32_0 : i32, i32
  }
  func.func @transform_8(%arg0: i32) -> (i32, i32) {
    %c0_i32 = arith.constant 0 : i32
    %c0_i32_0 = arith.constant 0 : i32
    %c0_i32_1 = arith.constant 0 : i32
    return %c0_i32, %c0_i32_0 : i32, i32
  }
  func.func @transform_9(%arg0: i32) -> (i32, i32) {
    %c0_i32 = arith.constant 0 : i32
    %c0_i32_0 = arith.constant 0 : i32
    %c0_i32_1 = arith.constant 0 : i32
    return %c0_i32, %c0_i32_0 : i32, i32
  }
  func.func @transform_10(%arg0: i32) -> (i32, i32) {
    %c0_i32 = arith.constant 0 : i32
    %c0_i32_0 = arith.constant 0 : i32
    %c0_i32_1 = arith.constant 0 : i32
    return %c0_i32, %c0_i32_0 : i32, i32
  }
  func.func @transform_11(%arg0: i32) -> (i32, i32) {
    %c0_i32 = arith.constant 0 : i32
    %c0_i32_0 = arith.constant 0 : i32
    return %arg0, %c0_i32 : i32, i32
  }
}

</mosaic_0001>

<llo_original>
// kernel: tpu_custom_call.1
$region0: #{tpu_custom_call.1}
  #allocation0 [shape = 'u32[]', space=smem, size = 0x4, offset = 0x4, fixed_abs, tag = 'smem constant byte address 0x4 - core index']
  #allocation1 [shape = 'u32[144,128]{1,0:T(1,128)}', space=vmem, size = 0x12000, scoped, tag = 'internal scratch']
  %s0 = inlined_call_operand.vmem [shape: f32[64,32], index: 0, kind: input, shape index: {}]
  %s1 = inlined_call_operand.vmem [shape: bf16[64,16], index: 1, kind: input, shape index: {}]
  %s2 = inlined_call_operand.hbm [shape: bf16[32,64], index: 2, kind: input, shape index: {}]
  %s3 = inlined_call_operand.vmem [shape: f32[1,64], index: 3, kind: input, shape index: {}]
  %s4 = inlined_call_operand.hbm [shape: bf16[64,128], index: 4, kind: input, shape index: {}]
  %s5 = inlined_call_operand.vmem [shape: bf16[16,128], index: 5, kind: input, shape index: {}]
  %s6 = inlined_call_operand.vmem [shape: f32[1,128], index: 6, kind: input, shape index: {}]
  %s7 = inlined_call_operand.vmem [shape: bf16[128,128], index: 7, kind: input, shape index: {}]
  %s8 = inlined_call_operand.vmem [shape: f32[1,128], index: 8, kind: input, shape index: {}]
  %s9 = inlined_call_operand.vmem [shape: bf16[128,128], index: 9, kind: input, shape index: {}]
  %s10 = inlined_call_operand.vmem [shape: f32[1,128], index: 10, kind: input, shape index: {}]
  %s11 = inlined_call_operand.hbm [shape: f32[64,128], index: 11, kind: output, shape index: {}]
  %s12 = sld [smem:[#allocation0]]
  $region62: #{tpu_custom_call.1} parent=0
    _
  %s14 = ssub.s32 1, %s12
  %s15 = scalar_select 0, %s14, %s12
  $region1: #{tpu_custom_call.1} parent=0
    #allocation2 [shape = 'u8[8192]{0}', space=vmem, size = 0x2000, scoped, tag = 'input window, operand 2, single buffered']
    #allocation3 [shape = 's32[1]{0}', space=sflag, size = 0x4, scoped, tag = 'scoped memory for tpu_custom_call.1']
    #allocation4 [shape = 's32[1]{0}', space=sflag, size = 0x4, scoped, tag = 'scoped memory for tpu_custom_call.1']
    #allocation5 [shape = 'u8[16384]{0}', space=vmem, size = 0x4000, scoped, tag = 'input window, operand 4, single buffered']
    #allocation6 [shape = 's32[1]{0}', space=sflag, size = 0x4, scoped, tag = 'scoped memory for tpu_custom_call.1']
    #allocation7 [shape = 'u8[32768]{0}', space=vmem, size = 0x8000, scoped, tag = 'output window, operand 0, single buffered']
    %16 = vsyncpa [#allocation3], 0
    %17 = vsyncpa [#allocation6], 0
    %18 = vsyncpa [#allocation4], 0
    // Predicated region
    $region2: #{tpu_custom_call.1} parent=1 // pred_check
      _
    $region3: #{tpu_custom_call.1} parent=1 // pred_check_branch
      %20 = sbr.rel (0) target = $region5
    $region4: #{tpu_custom_call.1} parent=1 // pred_region
      _
    $region5: #{tpu_custom_call.1} parent=1 // pred_fallthru
      _
    // Predicated region
    $region6: #{tpu_custom_call.1} parent=1 // pred_check
      _
    $region7: #{tpu_custom_call.1} parent=1 // pred_check_branch
      %22 = sbr.rel (0) target = $region9
    $region8: #{tpu_custom_call.1} parent=1 // pred_region
      _
    $region9: #{tpu_custom_call.1} parent=1 // pred_fallthru
      _
    // Predicated region
    $region10: #{tpu_custom_call.1} parent=1 // pred_check
      _
    $region11: #{tpu_custom_call.1} parent=1 // pred_check_branch
      %24 = sbr.rel (0) target = $region13
    $region12: #{tpu_custom_call.1} parent=1 // pred_region
      %s26 = ssub.s32 256, 256
      %27 = vsyncadd [#allocation3], %s26
      %s28 = sshll.u32 [#allocation2], 4
      %s29 = int_to_ptr.vmem [resolvable:$true] %s28
      %34 = dma.hbm_to_vmem [thread:$0]  %s2, 256, %s29, [#allocation3], 64, 64, 4
    $region13: #{tpu_custom_call.1} parent=1 // pred_fallthru
      _
    // Predicated region
    $region14: #{tpu_custom_call.1} parent=1 // pred_check
      _
    $region15: #{tpu_custom_call.1} parent=1 // pred_check_branch
      %36 = sbr.rel (0) target = $region17
    $region16: #{tpu_custom_call.1} parent=1 // pred_region
      _
    $region17: #{tpu_custom_call.1} parent=1 // pred_fallthru
      _
    // Predicated region
    $region18: #{tpu_custom_call.1} parent=1 // pred_check
      _
    $region19: #{tpu_custom_call.1} parent=1 // pred_check_branch
      %38 = sbr.rel (0) target = $region21
    $region20: #{tpu_custom_call.1} parent=1 // pred_region
      %s40 = ssub.s32 512, 512
      %41 = vsyncadd [#allocation6], %s40
      %s42 = sshll.u32 [#allocation5], 4
      %s43 = int_to_ptr.vmem [resolvable:$true] %s42
      %48 = dma.hbm_to_vmem [thread:$0]  %s4, 512, %s43, [#allocation6], 64, 64, 4
    $region21: #{tpu_custom_call.1} parent=1 // pred_fallthru
      _
    // Predicated region
    $region22: #{tpu_custom_call.1} parent=1 // pred_check
      _
    $region23: #{tpu_custom_call.1} parent=1 // pred_check_branch
      %50 = sbr.rel (0) target = $region25
    $region24: #{tpu_custom_call.1} parent=1 // pred_region
      _
    $region25: #{tpu_custom_call.1} parent=1 // pred_fallthru
      _
    // Predicated region
    $region26: #{tpu_custom_call.1} parent=1 // pred_check
      _
    $region27: #{tpu_custom_call.1} parent=1 // pred_check_branch
      %52 = sbr.rel (0) target = $region29
    $region28: #{tpu_custom_call.1} parent=1 // pred_region
      _
    $region29: #{tpu_custom_call.1} parent=1 // pred_fallthru
      _
    // Predicated region
    $region30: #{tpu_custom_call.1} parent=1 // pred_check
      _
    $region31: #{tpu_custom_call.1} parent=1 // pred_check_branch
      %54 = sbr.rel (0) target = $region33
    $region32: #{tpu_custom_call.1} parent=1 // pred_region
      _
    $region33: #{tpu_custom_call.1} parent=1 // pred_fallthru
      _
    // Predicated region
    $region34: #{tpu_custom_call.1} parent=1 // pred_check
      _
    $region35: #{tpu_custom_call.1} parent=1 // pred_check_branch
      %56 = sbr.rel (0) target = $region37
    $region36: #{tpu_custom_call.1} parent=1 // pred_region
      _
    $region37: #{tpu_custom_call.1} parent=1 // pred_fallthru
      _
    // Predicated region
    $region38: #{tpu_custom_call.1} parent=1 // pred_check
      _
    $region39: #{tpu_custom_call.1} parent=1 // pred_check_branch
      %58 = sbr.rel (0) target = $region41
    $region40: #{tpu_custom_call.1} parent=1 // pred_region
      _
    $region41: #{tpu_custom_call.1} parent=1 // pred_fallthru
      _
    // Predicated region
    $region42: #{tpu_custom_call.1} parent=1 // pred_check
      _
    $region43: #{tpu_custom_call.1} parent=1 // pred_check_branch
      %60 = sbr.rel (0) target = $region45
    $region44: #{tpu_custom_call.1} parent=1 // pred_region
      _
    $region45: #{tpu_custom_call.1} parent=1 // pred_fallthru
      _
    // Predicated region
    $region46: #{tpu_custom_call.1} parent=1 // pred_check
      _
    $region47: #{tpu_custom_call.1} parent=1 // pred_check_branch
      %62 = sbr.rel (0) target = $region49
    $region48: #{tpu_custom_call.1} parent=1 // pred_region
      %63 = dma.done [#allocation3], 256
    $region49: #{tpu_custom_call.1} parent=1 // pred_fallthru
      _
    // Predicated region
    $region50: #{tpu_custom_call.1} parent=1 // pred_check
      _
    $region51: #{tpu_custom_call.1} parent=1 // pred_check_branch
      %65 = sbr.rel (0) target = $region53
    $region52: #{tpu_custom_call.1} parent=1 // pred_region
      %66 = dma.done [#allocation6], 512
    $region53: #{tpu_custom_call.1} parent=1 // pred_fallthru
      _
    %v68 = vld [vmem:[%s0] sm:$0xff]
    %v69 = vld [vmem:[%s0 + $0x8] sm:$0xff]
    %v70 = vld [vmem:[%s0 + $0x10] sm:$0xff]
    %v71 = vld [vmem:[%s0 + $0x18] sm:$0xff]
    %v72 = vld [vmem:[%s0 + $0x20] sm:$0xff]
    %v73 = vld [vmem:[%s0 + $0x28] sm:$0xff]
    %v74 = vld [vmem:[%s0 + $0x30] sm:$0xff]
    %v75 = vld [vmem:[%s0 + $0x38] sm:$0xff]
    %v76 = vand.u32 2147483647, %v68
    %vm77 = vcmp.le.f32.partialorder %v76, 0.7853982
    %vm78 = vcmp.lt.s32.totalorder %v68, 0
    %v79 = vand.u32 %v68, 2139095040
    %v80 = vshrl.u32 %v79, 23
    %v81 = vsub.s32 %v80, 127
    %v82 = vand.u32 2147483647, %v68
    %v83 = vand.u32 %v82, 8388607
    %v84 = vor.u32 %v83, 8388608
    %v85 = vsub.s32 0, %v84
    %v86 = vadd.s32 %v81, 1
    %vm87 = vcmp.gt.s32.totalorder %v86, 0
    %v88 = vsel %vm87, %v86, 0
    %v89 = vshrl.u32 %v88, 5
    %v90 = vand.u32 %v88, 31
    %v91 = vsub.s32 32, %v90
    %v92 = vshrl.u32 683565275, %v91
    %v93 = vshll.u32 683565275, %v90
    %v94 = vshrl.u32 2475754826, %v91
    %v95 = vor.u32 %v93, %v94
    %v96 = vshll.u32 2475754826, %v90
    %v97 = vshrl.u32 2131351028, %v91
    %v98 = vor.u32 %v96, %v97
    %v99 = vshll.u32 2131351028, %v90
    %v100 = vshrl.u32 2102212464, %v91
    %v101 = vor.u32 %v99, %v100
    %v102 = vshll.u32 2102212464, %v90
    %v103 = vshrl.u32 920167782, %v91
    %v104 = vor.u32 %v102, %v103
    %v105 = vshll.u32 920167782, %v90
    %v106 = vshrl.u32 1326507024, %v91
    %v107 = vor.u32 %v105, %v106
    %vm108 = vcmp.lt.s32.totalorder %v89, 1
    %vm109 = vcmp.lt.s32.totalorder %v89, 2
    %vm110 = vcmp.lt.s32.totalorder %v89, 3
    %vm111 = vcmp.lt.s32.totalorder %v89, 4
    %v112 = vsel %vm108, %v92, %v95
    %v113 = vsel %vm111, %v101, 2102212464
    %v114 = vsel %vm110, %v98, %v113
    %v115 = vsel %vm109, %v112, %v114
    %v116 = vsel %vm108, %v95, %v98
    %v117 = vsel %vm111, %v104, 920167782
    %v118 = vsel %vm110, %v101, %v117
    %v119 = vsel %vm109, %v116, %v118
    %v120 = vsel %vm108, %v98, %v101
    %v121 = vsel %vm111, %v107, 1326507024
    %v122 = vsel %vm110, %v104, %v121
    %v123 = vsel %vm109, %v120, %v122
    %v124 = vshll.u32 %v84, 8
    %v125 = vmul.u32.u64.compose %v124, %v123
    %v126 = vextract.low.u32 %v125
    %v127 = vextract.high.u32 %v125
    %v128 = vmul.u32.u64.compose %v124, %v119
    %v129 = vextract.low.u32 %v128
    %v130 = vextract.high.u32 %v128
    %v131 = vmul.u32 %v124, %v115
    %v132 = vadd.s32 %v127, %v129
    %vm133 = vc.u32 %v127, %v129
    %v134 = vadd.s32 %v130, 1
    %v135 = vsel %vm133, %v134, %v130
    %v136 = vadd.s32 %v131, %v135
    %v137 = vadd.s32 %v136, 536870912
    %v138 = vshrl.u32 %v137, 30
    %v139 = vshll.u32 %v138, 30
    %v140 = vsub.s32 %v136, %v139
    %vm141 = vcmp.lt.s32.totalorder %v140, 0
    %v142 = vsub.s32 0, %v140
    %v143 = vsel %vm141, %v142, %v140
    %v144 = vclz %v143
    %v145 = vsub.s32 %v144, 2
    %vm146 = vcmp.gt.s32.totalorder 0, %v145
    %v147 = vsel %vm146, 0, %v145
    %v148 = vsub.s32 32, %v147
    %v149 = vshll.u32 %v140, %v147
    %v150 = vshrl.u32 %v132, %v148
    %v151 = vor.u32 %v149, %v150
    %v152 = vsub.s32 4294967266, %v147
    %v153 = vadd.s32 %v152, 127
    %v154 = vshll.u32 %v153, 23
    %v155 = vor.u32 4788187, %v154
    %v156 = vand.u32 2147483647, %v155
    %v158 = vcvt.s32.f32 %v151
    %v159 = vmul.f32 %v158, %v156
    %v160 = vxor.u32 %v159, 2147483648
    %v161 = vsel %vm78, %v160, %v159
    %v162 = vsub.s32 4, %v138
    %v163 = vsel %vm78, %v162, %v138
    %v164 = vsel %vm77, %v68, %v161
    %v165 = vsel %vm77, 0, %v163
    %v166 = vcosq.f32.pop %v164
    %v167 = vsinq.f32.pop %v164
    %vm168 = vweird.f32 %v68
    %v169 = vadd.s32 %v165, 3
    %v170 = vand.u32 %v169, 3
    %vm171 = vcmp.lt.s32.totalorder %v170, 2
    %vm172 = vcmp.eq.s32.totalorder %v170, 0
    %v173 = vxor.u32 %v167, 2147483648
    %v174 = vsel %vm172, %v166, %v173
    %vm175 = vcmp.eq.s32.totalorder %v170, 2
    %v176 = vxor.u32 %v166, 2147483648
    %v177 = vsel %vm175, %v176, %v167
    %v178 = vsel %vm171, %v174, %v177
    %v179 = vsel %vm168, nan, %v178
    %v180 = vand.u32 2147483647, %v69
    %vm181 = vcmp.le.f32.partialorder %v180, 0.7853982
    %vm182 = vcmp.lt.s32.totalorder %v69, 0
    %v183 = vand.u32 %v69, 2139095040
    %v184 = vshrl.u32 %v183, 23
    %v185 = vsub.s32 %v184, 127
    %v186 = vand.u32 2147483647, %v69
    %v187 = vand.u32 %v186, 8388607
    %v188 = vor.u32 %v187, 8388608
    %v189 = vsub.s32 0, %v188
    %v190 = vadd.s32 %v185, 1
    %vm191 = vcmp.gt.s32.totalorder %v190, 0
    %v192 = vsel %vm191, %v190, 0
    %v193 = vshrl.u32 %v192, 5
    %v194 = vand.u32 %v192, 31
    %v195 = vsub.s32 32, %v194
    %v196 = vshrl.u32 683565275, %v195
    %v197 = vshll.u32 683565275, %v194
    %v198 = vshrl.u32 2475754826, %v195
    %v199 = vor.u32 %v197, %v198
    %v200 = vshll.u32 2475754826, %v194
    %v201 = vshrl.u32 2131351028, %v195
    %v202 = vor.u32 %v200, %v201
    %v203 = vshll.u32 2131351028, %v194
    %v204 = vshrl.u32 2102212464, %v195
    %v205 = vor.u32 %v203, %v204
    %v206 = vshll.u32 2102212464, %v194
    %v207 = vshrl.u32 920167782, %v195
    %v208 = vor.u32 %v206, %v207
    %v209 = vshll.u32 920167782, %v194
    %v210 = vshrl.u32 1326507024, %v195
    %v211 = vor.u32 %v209, %v210
    %vm212 = vcmp.lt.s32.totalorder %v193, 1
    %vm213 = vcmp.lt.s32.totalorder %v193, 2
    %vm214 = vcmp.lt.s32.totalorder %v193, 3
    %vm215 = vcmp.lt.s32.totalorder %v193, 4
    %v216 = vsel %vm212, %v196, %v199
    %v217 = vsel %vm215, %v205, 2102212464
    %v218 = vsel %vm214, %v202, %v217
    %v219 = vsel %vm213, %v216, %v218
    %v220 = vsel %vm212, %v199, %v202
    %v221 = vsel %vm215, %v208, 920167782
    %v222 = vsel %vm214, %v205, %v221
    %v223 = vsel %vm213, %v220, %v222
    %v224 = vsel %vm212, %v202, %v205
    %v225 = vsel %vm215, %v211, 1326507024
    %v226 = vsel %vm214, %v208, %v225
    %v227 = vsel %vm213, %v224, %v226
    %v228 = vshll.u32 %v188, 8
    %v229 = vmul.u32.u64.compose %v228, %v227
    %v230 = vextract.low.u32 %v229
    %v231 = vextract.high.u32 %v229
    %v232 = vmul.u32.u64.compose %v228, %v223
    %v233 = vextract.low.u32 %v232
    %v234 = vextract.high.u32 %v232
    %v235 = vmul.u32 %v228, %v219
    %v236 = vadd.s32 %v231, %v233
    %vm237 = vc.u32 %v231, %v233
    %v238 = vadd.s32 %v234, 1
    %v239 = vsel %vm237, %v238, %v234
    %v240 = vadd.s32 %v235, %v239
    %v241 = vadd.s32 %v240, 536870912
    %v242 = vshrl.u32 %v241, 30
    %v243 = vshll.u32 %v242, 30
    %v244 = vsub.s32 %v240, %v243
    %vm245 = vcmp.lt.s32.totalorder %v244, 0
    %v246 = vsub.s32 0, %v244
    %v247 = vsel %vm245, %v246, %v244
    %v248 = vclz %v247
    %v249 = vsub.s32 %v248, 2
    %vm250 = vcmp.gt.s32.totalorder 0, %v249
    %v251 = vsel %vm250, 0, %v249
    %v252 = vsub.s32 32, %v251
    %v253 = vshll.u32 %v244, %v251
    %v254 = vshrl.u32 %v236, %v252
    %v255 = vor.u32 %v253, %v254
    %v256 = vsub.s32 4294967266, %v251
    %v257 = vadd.s32 %v256, 127
    %v258 = vshll.u32 %v257, 23
    %v259 = vor.u32 4788187, %v258
    %v260 = vand.u32 2147483647, %v259
    %v262 = vcvt.s32.f32 %v255
    %v263 = vmul.f32 %v262, %v260
    %v264 = vxor.u32 %v263, 2147483648
    %v265 = vsel %vm182, %v264, %v263
    %v266 = vsub.s32 4, %v242
    %v267 = vsel %vm182, %v266, %v242
    %v268 = vsel %vm181, %v69, %v265
    %v269 = vsel %vm181, 0, %v267
    %v270 = vcosq.f32.pop %v268
    %v271 = vsinq.f32.pop %v268
    %vm272 = vweird.f32 %v69
    %v273 = vadd.s32 %v269, 3
    %v274 = vand.u32 %v273, 3
    %vm275 = vcmp.lt.s32.totalorder %v274, 2
    %vm276 = vcmp.eq.s32.totalorder %v274, 0
    %v277 = vxor.u32 %v271, 2147483648
    %v278 = vsel %vm276, %v270, %v277
    %vm279 = vcmp.eq.s32.totalorder %v274, 2
    %v280 = vxor.u32 %v270, 2147483648
    %v281 = vsel %vm279, %v280, %v271
    %v282 = vsel %vm275, %v278, %v281
    %v283 = vsel %vm272, nan, %v282
    %v284 = vand.u32 2147483647, %v70
    %vm285 = vcmp.le.f32.partialorder %v284, 0.7853982
    %vm286 = vcmp.lt.s32.totalorder %v70, 0
    %v287 = vand.u32 %v70, 2139095040
    %v288 = vshrl.u32 %v287, 23
    %v289 = vsub.s32 %v288, 127
    %v290 = vand.u32 2147483647, %v70
    %v291 = vand.u32 %v290, 8388607
    %v292 = vor.u32 %v291, 8388608
    %v293 = vsub.s32 0, %v292
    %v294 = vadd.s32 %v289, 1
    %vm295 = vcmp.gt.s32.totalorder %v294, 0
    %v296 = vsel %vm295, %v294, 0
    %v297 = vshrl.u32 %v296, 5
    %v298 = vand.u32 %v296, 31
    %v299 = vsub.s32 32, %v298
    %v300 = vshrl.u32 683565275, %v299
    %v301 = vshll.u32 683565275, %v298
    %v302 = vshrl.u32 2475754826, %v299
    %v303 = vor.u32 %v301, %v302
    %v304 = vshll.u32 2475754826, %v298
    %v305 = vshrl.u32 2131351028, %v299
    %v306 = vor.u32 %v304, %v305
    %v307 = vshll.u32 2131351028, %v298
    %v308 = vshrl.u32 2102212464, %v299
    %v309 = vor.u32 %v307, %v308
    %v310 = vshll.u32 2102212464, %v298
    %v311 = vshrl.u32 920167782, %v299
    %v312 = vor.u32 %v310, %v311
    %v313 = vshll.u32 920167782, %v298
    %v314 = vshrl.u32 1326507024, %v299
    %v315 = vor.u32 %v313, %v314
    %vm316 = vcmp.lt.s32.totalorder %v297, 1
    %vm317 = vcmp.lt.s32.totalorder %v297, 2
    %vm318 = vcmp.lt.s32.totalorder %v297, 3
    %vm319 = vcmp.lt.s32.totalorder %v297, 4
    %v320 = vsel %vm316, %v300, %v303
    %v321 = vsel %vm319, %v309, 2102212464
    %v322 = vsel %vm318, %v306, %v321
    %v323 = vsel %vm317, %v320, %v322
    %v324 = vsel %vm316, %v303, %v306
    %v325 = vsel %vm319, %v312, 920167782
    %v326 = vsel %vm318, %v309, %v325
    %v327 = vsel %vm317, %v324, %v326
    %v328 = vsel %vm316, %v306, %v309
    %v329 = vsel %vm319, %v315, 1326507024
    %v330 = vsel %vm318, %v312, %v329
    %v331 = vsel %vm317, %v328, %v330
    %v332 = vshll.u32 %v292, 8
    %v333 = vmul.u32.u64.compose %v332, %v331
    %v334 = vextract.low.u32 %v333
    %v335 = vextract.high.u32 %v333
    %v336 = vmul.u32.u64.compose %v332, %v327
    %v337 = vextract.low.u32 %v336
    %v338 = vextract.high.u32 %v336
    %v339 = vmul.u32 %v332, %v323
    %v340 = vadd.s32 %v335, %v337
    %vm341 = vc.u32 %v335, %v337
    %v342 = vadd.s32 %v338, 1
    %v343 = vsel %vm341, %v342, %v338
    %v344 = vadd.s32 %v339, %v343
    %v345 = vadd.s32 %v344, 536870912
    %v346 = vshrl.u32 %v345, 30
    %v347 = vshll.u32 %v346, 30
    %v348 = vsub.s32 %v344, %v347
    %vm349 = vcmp.lt.s32.totalorder %v348, 0
    %v350 = vsub.s32 0, %v348
    %v351 = vsel %vm349, %v350, %v348
    %v352 = vclz %v351
    %v353 = vsub.s32 %v352, 2
    %vm354 = vcmp.gt.s32.totalorder 0, %v353
    %v355 = vsel %vm354, 0, %v353
    %v356 = vsub.s32 32, %v355
    %v357 = vshll.u32 %v348, %v355
    %v358 = vshrl.u32 %v340, %v356
    %v359 = vor.u32 %v357, %v358
    %v360 = vsub.s32 4294967266, %v355
    %v361 = vadd.s32 %v360, 127
    %v362 = vshll.u32 %v361, 23
    %v363 = vor.u32 4788187, %v362
    %v364 = vand.u32 2147483647, %v363
    %v366 = vcvt.s32.f32 %v359
    %v367 = vmul.f32 %v366, %v364
    %v368 = vxor.u32 %v367, 2147483648
    %v369 = vsel %vm286, %v368, %v367
    %v370 = vsub.s32 4, %v346
    %v371 = vsel %vm286, %v370, %v346
    %v372 = vsel %vm285, %v70, %v369
    %v373 = vsel %vm285, 0, %v371
    %v374 = vcosq.f32.pop %v372
    %v375 = vsinq.f32.pop %v372
    %vm376 = vweird.f32 %v70
    %v377 = vadd.s32 %v373, 3
    %v378 = vand.u32 %v377, 3
    %vm379 = vcmp.lt.s32.totalorder %v378, 2
    %vm380 = vcmp.eq.s32.totalorder %v378, 0
    %v381 = vxor.u32 %v375, 2147483648
    %v382 = vsel %vm380, %v374, %v381
    %vm383 = vcmp.eq.s32.totalorder %v378, 2
    %v384 = vxor.u32 %v374, 2147483648
    %v385 = vsel %vm383, %v384, %v375
    %v386 = vsel %vm379, %v382, %v385
    %v387 = vsel %vm376, nan, %v386
    %v388 = vand.u32 2147483647, %v71
    %vm389 = vcmp.le.f32.partialorder %v388, 0.7853982
    %vm390 = vcmp.lt.s32.totalorder %v71, 0
    %v391 = vand.u32 %v71, 2139095040
    %v392 = vshrl.u32 %v391, 23
    %v393 = vsub.s32 %v392, 127
    %v394 = vand.u32 2147483647, %v71
    %v395 = vand.u32 %v394, 8388607
    %v396 = vor.u32 %v395, 8388608
    %v397 = vsub.s32 0, %v396
    %v398 = vadd.s32 %v393, 1
    %vm399 = vcmp.gt.s32.totalorder %v398, 0
    %v400 = vsel %vm399, %v398, 0
    %v401 = vshrl.u32 %v400, 5
    %v402 = vand.u32 %v400, 31
    %v403 = vsub.s32 32, %v402
    %v404 = vshrl.u32 683565275, %v403
    %v405 = vshll.u32 683565275, %v402
    %v406 = vshrl.u32 2475754826, %v403
    %v407 = vor.u32 %v405, %v406
    %v408 = vshll.u32 2475754826, %v402
    %v409 = vshrl.u32 2131351028, %v403
    %v410 = vor.u32 %v408, %v409
    %v411 = vshll.u32 2131351028, %v402
    %v412 = vshrl.u32 2102212464, %v403
    %v413 = vor.u32 %v411, %v412
    %v414 = vshll.u32 2102212464, %v402
    %v415 = vshrl.u32 920167782, %v403
    %v416 = vor.u32 %v414, %v415
    %v417 = vshll.u32 920167782, %v402
    %v418 = vshrl.u32 1326507024, %v403
    %v419 = vor.u32 %v417, %v418
    %vm420 = vcmp.lt.s32.totalorder %v401, 1
    %vm421 = vcmp.lt.s32.totalorder %v401, 2
    %vm422 = vcmp.lt.s32.totalorder %v401, 3
    %vm423 = vcmp.lt.s32.totalorder %v401, 4
    %v424 = vsel %vm420, %v404, %v407
    %v425 = vsel %vm423, %v413, 2102212464
    %v426 = vsel %vm422, %v410, %v425
    %v427 = vsel %vm421, %v424, %v426
    %v428 = vsel %vm420, %v407, %v410
    %v429 = vsel %vm423, %v416, 920167782
    %v430 = vsel %vm422, %v413, %v429
    %v431 = vsel %vm421, %v428, %v430
    %v432 = vsel %vm420, %v410, %v413
    %v433 = vsel %vm423, %v419, 1326507024
    %v434 = vsel %vm422, %v416, %v433
    %v435 = vsel %vm421, %v432, %v434
    %v436 = vshll.u32 %v396, 8
    %v437 = vmul.u32.u64.compose %v436, %v435
    %v438 = vextract.low.u32 %v437
    %v439 = vextract.high.u32 %v437
    %v440 = vmul.u32.u64.compose %v436, %v431
    %v441 = vextract.low.u32 %v440
    %v442 = vextract.high.u32 %v440
    %v443 = vmul.u32 %v436, %v427
    %v444 = vadd.s32 %v439, %v441
    %vm445 = vc.u32 %v439, %v441
    %v446 = vadd.s32 %v442, 1
    %v447 = vsel %vm445, %v446, %v442
    %v448 = vadd.s32 %v443, %v447
    %v449 = vadd.s32 %v448, 536870912
    %v450 = vshrl.u32 %v449, 30
    %v451 = vshll.u32 %v450, 30
    %v452 = vsub.s32 %v448, %v451
    %vm453 = vcmp.lt.s32.totalorder %v452, 0
    %v454 = vsub.s32 0, %v452
    %v455 = vsel %vm453, %v454, %v452
    %v456 = vclz %v455
    %v457 = vsub.s32 %v456, 2
    %vm458 = vcmp.gt.s32.totalorder 0, %v457
    %v459 = vsel %vm458, 0, %v457
    %v460 = vsub.s32 32, %v459
    %v461 = vshll.u32 %v452, %v459
    %v462 = vshrl.u32 %v444, %v460
    %v463 = vor.u32 %v461, %v462
    %v464 = vsub.s32 4294967266, %v459
    %v465 = vadd.s32 %v464, 127
    %v466 = vshll.u32 %v465, 23
    %v467 = vor.u32 4788187, %v466
    %v468 = vand.u32 2147483647, %v467
    %v470 = vcvt.s32.f32 %v463
    %v471 = vmul.f32 %v470, %v468
    %v472 = vxor.u32 %v471, 2147483648
    %v473 = vsel %vm390, %v472, %v471
    %v474 = vsub.s32 4, %v450
    %v475 = vsel %vm390, %v474, %v450
    %v476 = vsel %vm389, %v71, %v473
    %v477 = vsel %vm389, 0, %v475
    %v478 = vcosq.f32.pop %v476
    %v479 = vsinq.f32.pop %v476
    %vm480 = vweird.f32 %v71
    %v481 = vadd.s32 %v477, 3
    %v482 = vand.u32 %v481, 3
    %vm483 = vcmp.lt.s32.totalorder %v482, 2
    %vm484 = vcmp.eq.s32.totalorder %v482, 0
    %v485 = vxor.u32 %v479, 2147483648
    %v486 = vsel %vm484, %v478, %v485
    %vm487 = vcmp.eq.s32.totalorder %v482, 2
    %v488 = vxor.u32 %v478, 2147483648
    %v489 = vsel %vm487, %v488, %v479
    %v490 = vsel %vm483, %v486, %v489
    %v491 = vsel %vm480, nan, %v490
    %v492 = vand.u32 2147483647, %v72
    %vm493 = vcmp.le.f32.partialorder %v492, 0.7853982
    %vm494 = vcmp.lt.s32.totalorder %v72, 0
    %v495 = vand.u32 %v72, 2139095040
    %v496 = vshrl.u32 %v495, 23
    %v497 = vsub.s32 %v496, 127
    %v498 = vand.u32 2147483647, %v72
    %v499 = vand.u32 %v498, 8388607
    %v500 = vor.u32 %v499, 8388608
    %v501 = vsub.s32 0, %v500
    %v502 = vadd.s32 %v497, 1
    %vm503 = vcmp.gt.s32.totalorder %v502, 0
    %v504 = vsel %vm503, %v502, 0
    %v505 = vshrl.u32 %v504, 5
    %v506 = vand.u32 %v504, 31
    %v507 = vsub.s32 32, %v506
    %v508 = vshrl.u32 683565275, %v507
    %v509 = vshll.u32 683565275, %v506
    %v510 = vshrl.u32 2475754826, %v507
    %v511 = vor.u32 %v509, %v510
    %v512 = vshll.u32 2475754826, %v506
    %v513 = vshrl.u32 2131351028, %v507
    %v514 = vor.u32 %v512, %v513
    %v515 = vshll.u32 2131351028, %v506
    %v516 = vshrl.u32 2102212464, %v507
    %v517 = vor.u32 %v515, %v516
    %v518 = vshll.u32 2102212464, %v506
    %v519 = vshrl.u32 920167782, %v507
    %v520 = vor.u32 %v518, %v519
    %v521 = vshll.u32 920167782, %v506
    %v522 = vshrl.u32 1326507024, %v507
    %v523 = vor.u32 %v521, %v522
    %vm524 = vcmp.lt.s32.totalorder %v505, 1
    %vm525 = vcmp.lt.s32.totalorder %v505, 2
    %vm526 = vcmp.lt.s32.totalorder %v505, 3
    %vm527 = vcmp.lt.s32.totalorder %v505, 4
    %v528 = vsel %vm524, %v508, %v511
    %v529 = vsel %vm527, %v517, 2102212464
    %v530 = vsel %vm526, %v514, %v529
    %v531 = vsel %vm525, %v528, %v530
    %v532 = vsel %vm524, %v511, %v514
    %v533 = vsel %vm527, %v520, 920167782
    %v534 = vsel %vm526, %v517, %v533
    %v535 = vsel %vm525, %v532, %v534
    %v536 = vsel %vm524, %v514, %v517
    %v537 = vsel %vm527, %v523, 1326507024
    %v538 = vsel %vm526, %v520, %v537
    %v539 = vsel %vm525, %v536, %v538
    %v540 = vshll.u32 %v500, 8
    %v541 = vmul.u32.u64.compose %v540, %v539
    %v542 = vextract.low.u32 %v541
    %v543 = vextract.high.u32 %v541
    %v544 = vmul.u32.u64.compose %v540, %v535
    %v545 = vextract.low.u32 %v544
    %v546 = vextract.high.u32 %v544
    %v547 = vmul.u32 %v540, %v531
    %v548 = vadd.s32 %v543, %v545
    %vm549 = vc.u32 %v543, %v545
    %v550 = vadd.s32 %v546, 1
    %v551 = vsel %vm549, %v550, %v546
    %v552 = vadd.s32 %v547, %v551
    %v553 = vadd.s32 %v552, 536870912
    %v554 = vshrl.u32 %v553, 30
    %v555 = vshll.u32 %v554, 30
    %v556 = vsub.s32 %v552, %v555
    %vm557 = vcmp.lt.s32.totalorder %v556, 0
    %v558 = vsub.s32 0, %v556
    %v559 = vsel %vm557, %v558, %v556
    %v560 = vclz %v559
    %v561 = vsub.s32 %v560, 2
    %vm562 = vcmp.gt.s32.totalorder 0, %v561
    %v563 = vsel %vm562, 0, %v561
    %v564 = vsub.s32 32, %v563
    %v565 = vshll.u32 %v556, %v563
    %v566 = vshrl.u32 %v548, %v564
    %v567 = vor.u32 %v565, %v566
    %v568 = vsub.s32 4294967266, %v563
    %v569 = vadd.s32 %v568, 127
    %v570 = vshll.u32 %v569, 23
    %v571 = vor.u32 4788187, %v570
    %v572 = vand.u32 2147483647, %v571
    %v574 = vcvt.s32.f32 %v567
    %v575 = vmul.f32 %v574, %v572
    %v576 = vxor.u32 %v575, 2147483648
    %v577 = vsel %vm494, %v576, %v575
    %v578 = vsub.s32 4, %v554
    %v579 = vsel %vm494, %v578, %v554
    %v580 = vsel %vm493, %v72, %v577
    %v581 = vsel %vm493, 0, %v579
    %v582 = vcosq.f32.pop %v580
    %v583 = vsinq.f32.pop %v580
    %vm584 = vweird.f32 %v72
    %v585 = vadd.s32 %v581, 3
    %v586 = vand.u32 %v585, 3
    %vm587 = vcmp.lt.s32.totalorder %v586, 2
    %vm588 = vcmp.eq.s32.totalorder %v586, 0
    %v589 = vxor.u32 %v583, 2147483648
    %v590 = vsel %vm588, %v582, %v589
    %vm591 = vcmp.eq.s32.totalorder %v586, 2
    %v592 = vxor.u32 %v582, 2147483648
    %v593 = vsel %vm591, %v592, %v583
    %v594 = vsel %vm587, %v590, %v593
    %v595 = vsel %vm584, nan, %v594
    %v596 = vand.u32 2147483647, %v73
    %vm597 = vcmp.le.f32.partialorder %v596, 0.7853982
    %vm598 = vcmp.lt.s32.totalorder %v73, 0
    %v599 = vand.u32 %v73, 2139095040
    %v600 = vshrl.u32 %v599, 23
    %v601 = vsub.s32 %v600, 127
    %v602 = vand.u32 2147483647, %v73
    %v603 = vand.u32 %v602, 8388607
    %v604 = vor.u32 %v603, 8388608
    %v605 = vsub.s32 0, %v604
    %v606 = vadd.s32 %v601, 1
    %vm607 = vcmp.gt.s32.totalorder %v606, 0
    %v608 = vsel %vm607, %v606, 0
    %v609 = vshrl.u32 %v608, 5
    %v610 = vand.u32 %v608, 31
    %v611 = vsub.s32 32, %v610
    %v612 = vshrl.u32 683565275, %v611
    %v613 = vshll.u32 683565275, %v610
    %v614 = vshrl.u32 2475754826, %v611
    %v615 = vor.u32 %v613, %v614
    %v616 = vshll.u32 2475754826, %v610
    %v617 = vshrl.u32 2131351028, %v611
    %v618 = vor.u32 %v616, %v617
    %v619 = vshll.u32 2131351028, %v610
    %v620 = vshrl.u32 2102212464, %v611
    %v621 = vor.u32 %v619, %v620
    %v622 = vshll.u32 2102212464, %v610
    %v623 = vshrl.u32 920167782, %v611
    %v624 = vor.u32 %v622, %v623
    %v625 = vshll.u32 920167782, %v610
    %v626 = vshrl.u32 1326507024, %v611
    %v627 = vor.u32 %v625, %v626
    %vm628 = vcmp.lt.s32.totalorder %v609, 1
    %vm629 = vcmp.lt.s32.totalorder %v609, 2
    %vm630 = vcmp.lt.s32.totalorder %v609, 3
    %vm631 = vcmp.lt.s32.totalorder %v609, 4
    %v632 = vsel %vm628, %v612, %v615
    %v633 = vsel %vm631, %v621, 2102212464
    %v634 = vsel %vm630, %v618, %v633
    %v635 = vsel %vm629, %v632, %v634
    %v636 = vsel %vm628, %v615, %v618
    %v637 = vsel %vm631, %v624, 920167782
    %v638 = vsel %vm630, %v621, %v637
    %v639 = vsel %vm629, %v636, %v638
    %v640 = vsel %vm628, %v618, %v621
    %v641 = vsel %vm631, %v627, 1326507024
    %v642 = vsel %vm630, %v624, %v641
    %v643 = vsel %vm629, %v640, %v642
    %v644 = vshll.u32 %v604, 8
    %v645 = vmul.u32.u64.compose %v644, %v643
    %v646 = vextract.low.u32 %v645
    %v647 = vextract.high.u32 %v645
    %v648 = vmul.u32.u64.compose %v644, %v639
    %v649 = vextract.low.u32 %v648
    %v650 = vextract.high.u32 %v648
    %v651 = vmul.u32 %v644, %v635
    %v652 = vadd.s32 %v647, %v649
    %vm653 = vc.u32 %v647, %v649
    %v654 = vadd.s32 %v650, 1
    %v655 = vsel %vm653, %v654, %v650
    %v656 = vadd.s32 %v651, %v655
    %v657 = vadd.s32 %v656, 536870912
    %v658 = vshrl.u32 %v657, 30
    %v659 = vshll.u32 %v658, 30
    %v660 = vsub.s32 %v656, %v659
    %vm661 = vcmp.lt.s32.totalorder %v660, 0
    %v662 = vsub.s32 0, %v660
    %v663 = vsel %vm661, %v662, %v660
    %v664 = vclz %v663
    %v665 = vsub.s32 %v664, 2
    %vm666 = vcmp.gt.s32.totalorder 0, %v665
    %v667 = vsel %vm666, 0, %v665
    %v668 = vsub.s32 32, %v667
    %v669 = vshll.u32 %v660, %v667
    %v670 = vshrl.u32 %v652, %v668
    %v671 = vor.u32 %v669, %v670
    %v672 = vsub.s32 4294967266, %v667
    %v673 = vadd.s32 %v672, 127
    %v674 = vshll.u32 %v673, 23
    %v675 = vor.u32 4788187, %v674
    %v676 = vand.u32 2147483647, %v675
    %v678 = vcvt.s32.f32 %v671
    %v679 = vmul.f32 %v678, %v676
    %v680 = vxor.u32 %v679, 2147483648
    %v681 = vsel %vm598, %v680, %v679
    %v682 = vsub.s32 4, %v658
    %v683 = vsel %vm598, %v682, %v658
    %v684 = vsel %vm597, %v73, %v681
    %v685 = vsel %vm597, 0, %v683
    %v686 = vcosq.f32.pop %v684
    %v687 = vsinq.f32.pop %v684
    %vm688 = vweird.f32 %v73
    %v689 = vadd.s32 %v685, 3
    %v690 = vand.u32 %v689, 3
    %vm691 = vcmp.lt.s32.totalorder %v690, 2
    %vm692 = vcmp.eq.s32.totalorder %v690, 0
    %v693 = vxor.u32 %v687, 2147483648
    %v694 = vsel %vm692, %v686, %v693
    %vm695 = vcmp.eq.s32.totalorder %v690, 2
    %v696 = vxor.u32 %v686, 2147483648
    %v697 = vsel %vm695, %v696, %v687
    %v698 = vsel %vm691, %v694, %v697
    %v699 = vsel %vm688, nan, %v698
    %v700 = vand.u32 2147483647, %v74
    %vm701 = vcmp.le.f32.partialorder %v700, 0.7853982
    %vm702 = vcmp.lt.s32.totalorder %v74, 0
    %v703 = vand.u32 %v74, 2139095040
    %v704 = vshrl.u32 %v703, 23
    %v705 = vsub.s32 %v704, 127
    %v706 = vand.u32 2147483647, %v74
    %v707 = vand.u32 %v706, 8388607
    %v708 = vor.u32 %v707, 8388608
    %v709 = vsub.s32 0, %v708
    %v710 = vadd.s32 %v705, 1
    %vm711 = vcmp.gt.s32.totalorder %v710, 0
    %v712 = vsel %vm711, %v710, 0
    %v713 = vshrl.u32 %v712, 5
    %v714 = vand.u32 %v712, 31
    %v715 = vsub.s32 32, %v714
    %v716 = vshrl.u32 683565275, %v715
    %v717 = vshll.u32 683565275, %v714
    %v718 = vshrl.u32 2475754826, %v715
    %v719 = vor.u32 %v717, %v718
    %v720 = vshll.u32 2475754826, %v714
    %v721 = vshrl.u32 2131351028, %v715
    %v722 = vor.u32 %v720, %v721
    %v723 = vshll.u32 2131351028, %v714
    %v724 = vshrl.u32 2102212464, %v715
    %v725 = vor.u32 %v723, %v724
    %v726 = vshll.u32 2102212464, %v714
    %v727 = vshrl.u32 920167782, %v715
    %v728 = vor.u32 %v726, %v727
    %v729 = vshll.u32 920167782, %v714
    %v730 = vshrl.u32 1326507024, %v715
    %v731 = vor.u32 %v729, %v730
    %vm732 = vcmp.lt.s32.totalorder %v713, 1
    %vm733 = vcmp.lt.s32.totalorder %v713, 2
    %vm734 = vcmp.lt.s32.totalorder %v713, 3
    %vm735 = vcmp.lt.s32.totalorder %v713, 4
    %v736 = vsel %vm732, %v716, %v719
    %v737 = vsel %vm735, %v725, 2102212464
    %v738 = vsel %vm734, %v722, %v737
    %v739 = vsel %vm733, %v736, %v738
    %v740 = vsel %vm732, %v719, %v722
    %v741 = vsel %vm735, %v728, 920167782
    %v742 = vsel %vm734, %v725, %v741
    %v743 = vsel %vm733, %v740, %v742
    %v744 = vsel %vm732, %v722, %v725
    %v745 = vsel %vm735, %v731, 1326507024
    %v746 = vsel %vm734, %v728, %v745
    %v747 = vsel %vm733, %v744, %v746
    %v748 = vshll.u32 %v708, 8
    %v749 = vmul.u32.u64.compose %v748, %v747
    %v750 = vextract.low.u32 %v749
    %v751 = vextract.high.u32 %v749
    %v752 = vmul.u32.u64.compose %v748, %v743
    %v753 = vextract.low.u32 %v752
    %v754 = vextract.high.u32 %v752
    %v755 = vmul.u32 %v748, %v739
    %v756 = vadd.s32 %v751, %v753
    %vm757 = vc.u32 %v751, %v753
    %v758 = vadd.s32 %v754, 1
    %v759 = vsel %vm757, %v758, %v754
    %v760 = vadd.s32 %v755, %v759
    %v761 = vadd.s32 %v760, 536870912
    %v762 = vshrl.u32 %v761, 30
    %v763 = vshll.u32 %v762, 30
    %v764 = vsub.s32 %v760, %v763
    %vm765 = vcmp.lt.s32.totalorder %v764, 0
    %v766 = vsub.s32 0, %v764
    %v767 = vsel %vm765, %v766, %v764
    %v768 = vclz %v767
    %v769 = vsub.s32 %v768, 2
    %vm770 = vcmp.gt.s32.totalorder 0, %v769
    %v771 = vsel %vm770, 0, %v769
    %v772 = vsub.s32 32, %v771
    %v773 = vshll.u32 %v764, %v771
    %v774 = vshrl.u32 %v756, %v772
    %v775 = vor.u32 %v773, %v774
    %v776 = vsub.s32 4294967266, %v771
    %v777 = vadd.s32 %v776, 127
    %v778 = vshll.u32 %v777, 23
    %v779 = vor.u32 4788187, %v778
    %v780 = vand.u32 2147483647, %v779
    %v782 = vcvt.s32.f32 %v775
    %v783 = vmul.f32 %v782, %v780
    %v784 = vxor.u32 %v783, 2147483648
    %v785 = vsel %vm702, %v784, %v783
    %v786 = vsub.s32 4, %v762
    %v787 = vsel %vm702, %v786, %v762
    %v788 = vsel %vm701, %v74, %v785
    %v789 = vsel %vm701, 0, %v787
    %v790 = vcosq.f32.pop %v788
    %v791 = vsinq.f32.pop %v788
    %vm792 = vweird.f32 %v74
    %v793 = vadd.s32 %v789, 3
    %v794 = vand.u32 %v793, 3
    %vm795 = vcmp.lt.s32.totalorder %v794, 2
    %vm796 = vcmp.eq.s32.totalorder %v794, 0
    %v797 = vxor.u32 %v791, 2147483648
    %v798 = vsel %vm796, %v790, %v797
    %vm799 = vcmp.eq.s32.totalorder %v794, 2
    %v800 = vxor.u32 %v790, 2147483648
    %v801 = vsel %vm799, %v800, %v791
    %v802 = vsel %vm795, %v798, %v801
    %v803 = vsel %vm792, nan, %v802
    %v804 = vand.u32 2147483647, %v75
    %vm805 = vcmp.le.f32.partialorder %v804, 0.7853982
    %vm806 = vcmp.lt.s32.totalorder %v75, 0
    %v807 = vand.u32 %v75, 2139095040
    %v808 = vshrl.u32 %v807, 23
    %v809 = vsub.s32 %v808, 127
    %v810 = vand.u32 2147483647, %v75
    %v811 = vand.u32 %v810, 8388607
    %v812 = vor.u32 %v811, 8388608
    %v813 = vsub.s32 0, %v812
    %v814 = vadd.s32 %v809, 1
    %vm815 = vcmp.gt.s32.totalorder %v814, 0
    %v816 = vsel %vm815, %v814, 0
    %v817 = vshrl.u32 %v816, 5
    %v818 = vand.u32 %v816, 31
    %v819 = vsub.s32 32, %v818
    %v820 = vshrl.u32 683565275, %v819
    %v821 = vshll.u32 683565275, %v818
    %v822 = vshrl.u32 2475754826, %v819
    %v823 = vor.u32 %v821, %v822
    %v824 = vshll.u32 2475754826, %v818
    %v825 = vshrl.u32 2131351028, %v819
    %v826 = vor.u32 %v824, %v825
    %v827 = vshll.u32 2131351028, %v818
    %v828 = vshrl.u32 2102212464, %v819
    %v829 = vor.u32 %v827, %v828
    %v830 = vshll.u32 2102212464, %v818
    %v831 = vshrl.u32 920167782, %v819
    %v832 = vor.u32 %v830, %v831
    %v833 = vshll.u32 920167782, %v818
    %v834 = vshrl.u32 1326507024, %v819
    %v835 = vor.u32 %v833, %v834
    %vm836 = vcmp.lt.s32.totalorder %v817, 1
    %vm837 = vcmp.lt.s32.totalorder %v817, 2
    %vm838 = vcmp.lt.s32.totalorder %v817, 3
    %vm839 = vcmp.lt.s32.totalorder %v817, 4
    %v840 = vsel %vm836, %v820, %v823
    %v841 = vsel %vm839, %v829, 2102212464
    %v842 = vsel %vm838, %v826, %v841
    %v843 = vsel %vm837, %v840, %v842
    %v844 = vsel %vm836, %v823, %v826
    %v845 = vsel %vm839, %v832, 920167782
    %v846 = vsel %vm838, %v829, %v845
    %v847 = vsel %vm837, %v844, %v846
    %v848 = vsel %vm836, %v826, %v829
    %v849 = vsel %vm839, %v835, 1326507024
    %v850 = vsel %vm838, %v832, %v849
    %v851 = vsel %vm837, %v848, %v850
    %v852 = vshll.u32 %v812, 8
    %v853 = vmul.u32.u64.compose %v852, %v851
    %v854 = vextract.low.u32 %v853
    %v855 = vextract.high.u32 %v853
    %v856 = vmul.u32.u64.compose %v852, %v847
    %v857 = vextract.low.u32 %v856
    %v858 = vextract.high.u32 %v856
    %v859 = vmul.u32 %v852, %v843
    %v860 = vadd.s32 %v855, %v857
    %vm861 = vc.u32 %v855, %v857
    %v862 = vadd.s32 %v858, 1
    %v863 = vsel %vm861, %v862, %v858
    %v864 = vadd.s32 %v859, %v863
    %v865 = vadd.s32 %v864, 536870912
    %v866 = vshrl.u32 %v865, 30
    %v867 = vshll.u32 %v866, 30
    %v868 = vsub.s32 %v864, %v867
    %vm869 = vcmp.lt.s32.totalorder %v868, 0
    %v870 = vsub.s32 0, %v868
    %v871 = vsel %vm869, %v870, %v868
    %v872 = vclz %v871
    %v873 = vsub.s32 %v872, 2
    %vm874 = vcmp.gt.s32.totalorder 0, %v873
    %v875 = vsel %vm874, 0, %v873
    %v876 = vsub.s32 32, %v875
    %v877 = vshll.u32 %v868, %v875
    %v878 = vshrl.u32 %v860, %v876
    %v879 = vor.u32 %v877, %v878
    %v880 = vsub.s32 4294967266, %v875
    %v881 = vadd.s32 %v880, 127
    %v882 = vshll.u32 %v881, 23
    %v883 = vor.u32 4788187, %v882
    %v884 = vand.u32 2147483647, %v883
    %v886 = vcvt.s32.f32 %v879
    %v887 = vmul.f32 %v886, %v884
    %v888 = vxor.u32 %v887, 2147483648
    %v889 = vsel %vm806, %v888, %v887
    %v890 = vsub.s32 4, %v866
    %v891 = vsel %vm806, %v890, %v866
    %v892 = vsel %vm805, %v75, %v889
    %v893 = vsel %vm805, 0, %v891
    %v894 = vcosq.f32.pop %v892
    %v895 = vsinq.f32.pop %v892
    %vm896 = vweird.f32 %v75
    %v897 = vadd.s32 %v893, 3
    %v898 = vand.u32 %v897, 3
    %vm899 = vcmp.lt.s32.totalorder %v898, 2
    %vm900 = vcmp.eq.s32.totalorder %v898, 0
    %v901 = vxor.u32 %v895, 2147483648
    %v902 = vsel %vm900, %v894, %v901
    %vm903 = vcmp.eq.s32.totalorder %v898, 2
    %v904 = vxor.u32 %v894, 2147483648
    %v905 = vsel %vm903, %v904, %v895
    %v906 = vsel %vm899, %v902, %v905
    %v907 = vsel %vm896, nan, %v906
    %v908 = vpack.c.bf16 %v283, %v179
    %v909 = vpack.c.bf16 %v491, %v387
    %v910 = vpack.c.bf16 %v699, %v595
    %v911 = vpack.c.bf16 %v907, %v803
    %v912 = vld [vmem:[#allocation2] sm:$0xf]
    %v913 = vld [vmem:[#allocation2 + $0x4] sm:$0xf]
    %v914 = vld [vmem:[#allocation2 + $0x8] sm:$0xf]
    %v915 = vld [vmem:[#allocation2 + $0xc] sm:$0xf]
    %v916 = vld [vmem:[%s3] sm:$0x1]
    %v918 = vlaneseq
    %v919 = vshrl.u32 %v918, 7
    %v920 = vsub.s32 0, %v919
    %v921 = vrot.slane %v916, %v920
    %v927 = vunpack.c.l.b16 %v912
    %v928 = vunpack.c.l.b16 %v913
    %v929 = vunpack.c.l.b16 %v914
    %v930 = vunpack.c.l.b16 %v915
    %v931 = vpack.c.b16 %v928, %v927
    %v932 = vpack.c.b16 %v930, %v929
    %vm935 = vcmask 261120
    %v937 = vsel %vm935, %v908, 0
    %v940 = vsel %vm935, %v909, 0
    %v943 = vsel %vm935, %v910, 0
    %v946 = vsel %vm935, %v911, 0
    %948 = vmatprep.subr.bf16.mxu0 0
    %949 = vmatpush1.bf16.msra.mxu0 %v931
    %950 = vmatprep.subr.bf16.mxu0 0
    %951 = vmatpush1.bf16.msra.mxu0 %v932
    %952 = vmatprep.subr.bf16.mxu0 0
    %953 = vmatpush1.bf16.msra.mxu0 0
    %954 = vmatprep.subr.bf16.mxu0 0
    %955 = vmatpush1.bf16.msra.mxu0 0
    %956 = vmatprep.subr.bf16.mxu0 0
    %957 = vmatpush1.bf16.msra.mxu0 0
    %958 = vmatprep.subr.bf16.mxu0 0
    %959 = vmatpush1.bf16.msra.mxu0 0
    %960 = vmatprep.subr.bf16.mxu0 0
    %961 = vmatpush1.bf16.msra.mxu0 0
    %962 = vmatprep.subr.bf16.mxu0 0
    %963 = vmatpush1.bf16.msra.mxu0 0
    %964 = vmatprep.subr.bf16.mxu0 0
    %965 = vmatpush1.bf16.msra.mxu0 0
    %966 = vmatprep.subr.bf16.mxu0 0
    %967 = vmatpush1.bf16.msra.mxu0 0
    %968 = vmatprep.subr.bf16.mxu0 0
    %969 = vmatpush1.bf16.msra.mxu0 0
    %970 = vmatprep.subr.bf16.mxu0 0
    %971 = vmatpush1.bf16.msra.mxu0 0
    %972 = vmatprep.subr.bf16.mxu0 0
    %973 = vmatpush1.bf16.msra.mxu0 0
    %974 = vmatprep.subr.bf16.mxu0 0
    %975 = vmatpush1.bf16.msra.mxu0 0
    %976 = vmatprep.subr.bf16.mxu0 0
    %977 = vmatpush1.bf16.msra.mxu0 0
    %978 = vmatprep.subr.bf16.mxu0 0
    %979 = vmatpush1.bf16.msra.mxu0 0
    %980 = vmatprep.mubr.bf16.mxu0 0
    %981 = vmatmul.mubr.bf16.gmra.mrb[0].mxu0 %v937
    %v982 = vpop.f32.mrb[0].mxu0
    %v983 = vadd.f32 %v921, %v982
    %v984 = vpop.f32.mrb[0].mxu0
    %v985 = vpop.f32.mrb[0].mxu0
    %v986 = vadd.f32 %v921, %v985
    %v987 = vpop.f32.mrb[0].mxu0
    %988 = vmatprep.mubr.bf16.mxu0 0
    %989 = vmatmul.mubr.bf16.gmra.mrb[0].mxu0 %v940
    %v990 = vpop.f32.mrb[0].mxu0
    %v991 = vadd.f32 %v921, %v990
    %v992 = vpop.f32.mrb[0].mxu0
    %v993 = vpop.f32.mrb[0].mxu0
    %v994 = vadd.f32 %v921, %v993
    %v995 = vpop.f32.mrb[0].mxu0
    %996 = vmatprep.mubr.bf16.mxu0 0
    %997 = vmatmul.mubr.bf16.gmra.mrb[0].mxu0 %v943
    %v998 = vpop.f32.mrb[0].mxu0
    %v999 = vadd.f32 %v921, %v998
    %v1000 = vpop.f32.mrb[0].mxu0
    %v1001 = vpop.f32.mrb[0].mxu0
    %v1002 = vadd.f32 %v921, %v1001
    %v1003 = vpop.f32.mrb[0].mxu0
    %1004 = vmatprep.mubr.bf16.mxu0 0
    %1005 = vmatmul.mubr.bf16.gmra.mrb[0].mxu0 %v946
    %v1006 = vpop.f32.mrb[0].mxu0
    %v1007 = vadd.f32 %v921, %v1006
    %v1008 = vpop.f32.mrb[0].mxu0
    %v1009 = vpop.f32.mrb[0].mxu0
    %v1010 = vadd.f32 %v921, %v1009
    %v1011 = vpop.f32.mrb[0].mxu0
    %1012 = vdwg.mxu0
    %v1013 = vmax.f32 %v983, 0.0
    %v1014 = vmax.f32 %v986, 0.0
    %v1015 = vmax.f32 %v991, 0.0
    %v1016 = vmax.f32 %v994, 0.0
    %v1017 = vmax.f32 %v999, 0.0
    %v1018 = vmax.f32 %v1002, 0.0
    %v1019 = vmax.f32 %v1007, 0.0
    %v1020 = vmax.f32 %v1010, 0.0
    %v1021 = vld [vmem:[%s1] sm:$0xf]
    %v1022 = vld [vmem:[%s1 + $0x4] sm:$0xf]
    %v1023 = vld [vmem:[%s1 + $0x8] sm:$0xf]
    %v1024 = vld [vmem:[%s1 + $0xc] sm:$0xf]
    %v1025 = vld [vmem:[%s1 + $0x10] sm:$0xf]
    %v1026 = vld [vmem:[%s1 + $0x14] sm:$0xf]
    %v1027 = vld [vmem:[%s1 + $0x18] sm:$0xf]
    %v1028 = vld [vmem:[%s1 + $0x1c] sm:$0xf]
    %v1029 = vld [vmem:[%s5] sm:$0xf]
    %v1030 = vld [vmem:[%s5 + $0x4] sm:$0xf]
    %v1031 = vpack.c.bf16 %v1014, %v1013
    %v1032 = vpack.c.bf16 %v1016, %v1015
    %v1033 = vpack.c.bf16 %v1018, %v1017
    %v1034 = vpack.c.bf16 %v1020, %v1019
    %v1035 = vld [vmem:[#allocation5] sm:$0xf]
    %v1036 = vld [vmem:[#allocation5 + $0x4] sm:$0xf]
    %v1037 = vld [vmem:[#allocation5 + $0x8] sm:$0xf]
    %v1038 = vld [vmem:[#allocation5 + $0xc] sm:$0xf]
    %v1039 = vld [vmem:[#allocation5 + $0x10] sm:$0xf]
    %v1040 = vld [vmem:[#allocation5 + $0x14] sm:$0xf]
    %v1041 = vld [vmem:[#allocation5 + $0x18] sm:$0xf]
    %v1042 = vld [vmem:[#allocation5 + $0x1c] sm:$0xf]
    %v1051 = vunpack.c.l.b16 %v1035
    %v1052 = vunpack.c.l.b16 %v1036
    %v1053 = vunpack.c.l.b16 %v1037
    %v1054 = vunpack.c.l.b16 %v1038
    %v1055 = vunpack.c.l.b16 %v1039
    %v1056 = vunpack.c.l.b16 %v1040
    %v1057 = vunpack.c.l.b16 %v1041
    %v1058 = vunpack.c.l.b16 %v1042
    %v1059 = vpack.c.b16 %v1052, %v1051
    %v1060 = vpack.c.b16 %v1054, %v1053
    %v1061 = vpack.c.b16 %v1056, %v1055
    %v1062 = vpack.c.b16 %v1058, %v1057
    %vm1067 = vcmask 523264
    %v1069 = vsel %vm1067, %v1031, 0
    %v1072 = vsel %vm1067, %v1032, 0
    %v1075 = vsel %vm1067, %v1033, 0
    %v1078 = vsel %vm1067, %v1034, 0
    %1080 = vmatprep.subr.bf16.mxu0 0
    %1081 = vmatpush1.bf16.msra.mxu0 %v1059
    %1082 = vmatprep.subr.bf16.mxu0 0
    %1083 = vmatpush1.bf16.msra.mxu0 %v1060
    %1084 = vmatprep.subr.bf16.mxu0 0
    %1085 = vmatpush1.bf16.msra.mxu0 %v1061
    %1086 = vmatprep.subr.bf16.mxu0 0
    %1087 = vmatpush1.bf16.msra.mxu0 %v1062
    %1088 = vmatprep.subr.bf16.mxu0 0
    %1089 = vmatpush1.bf16.msra.mxu0 0
    %1090 = vmatprep.subr.bf16.mxu0 0
    %1091 = vmatpush1.bf16.msra.mxu0 0
    %1092 = vmatprep.subr.bf16.mxu0 0
    %1093 = vmatpush1.bf16.msra.mxu0 0
    %1094 = vmatprep.subr.bf16.mxu0 0
    %1095 = vmatpush1.bf16.msra.mxu0 0
    %1096 = vmatprep.subr.bf16.mxu0 0
    %1097 = vmatpush1.bf16.msra.mxu0 0
    %1098 = vmatprep.subr.bf16.mxu0 0
    %1099 = vmatpush1.bf16.msra.mxu0 0
    %1100 = vmatprep.subr.bf16.mxu0 0
    %1101 = vmatpush1.bf16.msra.mxu0 0
    %1102 = vmatprep.subr.bf16.mxu0 0
    %1103 = vmatpush1.bf16.msra.mxu0 0
    %1104 = vmatprep.subr.bf16.mxu0 0
    %1105 = vmatpush1.bf16.msra.mxu0 0
    %1106 = vmatprep.subr.bf16.mxu0 0
    %1107 = vmatpush1.bf16.msra.mxu0 0
    %1108 = vmatprep.subr.bf16.mxu0 0
    %1109 = vmatpush1.bf16.msra.mxu0 0
    %1110 = vmatprep.subr.bf16.mxu0 0
    %1111 = vmatpush1.bf16.msra.mxu0 0
    %1112 = vmatprep.mubr.bf16.mxu0 0
    %1113 = vmatmul.mubr.bf16.gmra.mrb[0].mxu0 %v1069
    %v1114 = vpop.f32.mrb[0].mxu0
    %v1115 = vadd.f32 0.0, %v1114
    %v1116 = vpop.f32.mrb[0].mxu0
    %v1117 = vpop.f32.mrb[0].mxu0
    %v1118 = vadd.f32 0.0, %v1117
    %v1119 = vpop.f32.mrb[0].mxu0
    %1120 = vmatprep.mubr.bf16.mxu0 0
    %1121 = vmatmul.mubr.bf16.gmra.mrb[0].mxu0 %v1072
    %v1122 = vpop.f32.mrb[0].mxu0
    %v1123 = vadd.f32 0.0, %v1122
    %v1124 = vpop.f32.mrb[0].mxu0
    %v1125 = vpop.f32.mrb[0].mxu0
    %v1126 = vadd.f32 0.0, %v1125
    %v1127 = vpop.f32.mrb[0].mxu0
    %1128 = vmatprep.mubr.bf16.mxu0 0
    %1129 = vmatmul.mubr.bf16.gmra.mrb[0].mxu0 %v1075
    %v1130 = vpop.f32.mrb[0].mxu0
    %v1131 = vadd.f32 0.0, %v1130
    %v1132 = vpop.f32.mrb[0].mxu0
    %v1133 = vpop.f32.mrb[0].mxu0
    %v1134 = vadd.f32 0.0, %v1133
    %v1135 = vpop.f32.mrb[0].mxu0
    %1136 = vmatprep.mubr.bf16.mxu0 0
    %1137 = vmatmul.mubr.bf16.gmra.mrb[0].mxu0 %v1078
    %v1138 = vpop.f32.mrb[0].mxu0
    %v1139 = vadd.f32 0.0, %v1138
    %v1140 = vpop.f32.mrb[0].mxu0
    %v1141 = vpop.f32.mrb[0].mxu0
    %v1142 = vadd.f32 0.0, %v1141
    %v1143 = vpop.f32.mrb[0].mxu0
    %1144 = vdwg.mxu0
    %v1153 = vunpack.c.l.b16 %v1021
    %v1154 = vunpack.c.l.b16 %v1022
    %v1155 = vunpack.c.l.b16 %v1023
    %v1156 = vunpack.c.l.b16 %v1024
    %v1157 = vunpack.c.l.b16 %v1025
    %v1158 = vunpack.c.l.b16 %v1026
    %v1159 = vunpack.c.l.b16 %v1027
    %v1160 = vunpack.c.l.b16 %v1028
    %v1161 = vpack.c.b16 %v1154, %v1153
    %v1162 = vpack.c.b16 %v1156, %v1155
    %v1163 = vpack.c.b16 %v1158, %v1157
    %v1164 = vpack.c.b16 %v1160, %v1159
    %v1167 = vunpack.c.l.b16 %v1029
    %v1168 = vunpack.c.l.b16 %v1030
    %v1169 = vpack.c.b16 %v1168, %v1167
    %vm1171 = vcmask 130048
    %v1173 = vsel %vm1171, %v1161, 0
    %v1176 = vsel %vm1171, %v1162, 0
    %v1179 = vsel %vm1171, %v1163, 0
    %v1182 = vsel %vm1171, %v1164, 0
    %1184 = vmatprep.subr.bf16.mxu0 0
    %1185 = vmatpush1.bf16.msra.mxu0 %v1169
    %1186 = vmatprep.subr.bf16.mxu0 0
    %1187 = vmatpush1.bf16.msra.mxu0 0
    %1188 = vmatprep.subr.bf16.mxu0 0
    %1189 = vmatpush1.bf16.msra.mxu0 0
    %1190 = vmatprep.subr.bf16.mxu0 0
    %1191 = vmatpush1.bf16.msra.mxu0 0
    %1192 = vmatprep.subr.bf16.mxu0 0
    %1193 = vmatpush1.bf16.msra.mxu0 0
    %1194 = vmatprep.subr.bf16.mxu0 0
    %1195 = vmatpush1.bf16.msra.mxu0 0
    %1196 = vmatprep.subr.bf16.mxu0 0
    %1197 = vmatpush1.bf16.msra.mxu0 0
    %1198 = vmatprep.subr.bf16.mxu0 0
    %1199 = vmatpush1.bf16.msra.mxu0 0
    %1200 = vmatprep.subr.bf16.mxu0 0
    %1201 = vmatpush1.bf16.msra.mxu0 0
    %1202 = vmatprep.subr.bf16.mxu0 0
    %1203 = vmatpush1.bf16.msra.mxu0 0
    %1204 = vmatprep.subr.bf16.mxu0 0
    %1205 = vmatpush1.bf16.msra.mxu0 0
    %1206 = vmatprep.subr.bf16.mxu0 0
    %1207 = vmatpush1.bf16.msra.mxu0 0
    %1208 = vmatprep.subr.bf16.mxu0 0
    %1209 = vmatpush1.bf16.msra.mxu0 0
    %1210 = vmatprep.subr.bf16.mxu0 0
    %1211 = vmatpush1.bf16.msra.mxu0 0
    %1212 = vmatprep.subr.bf16.mxu0 0
    %1213 = vmatpush1.bf16.msra.mxu0 0
    %1214 = vmatprep.subr.bf16.mxu0 0
    %1215 = vmatpush1.bf16.msra.mxu0 0
    %1216 = vmatprep.mubr.bf16.mxu0 0
    %1217 = vmatmul.mubr.bf16.gmra.mrb[0].mxu0 %v1173
    %v1218 = vpop.f32.mrb[0].mxu0
    %v1219 = vadd.f32 %v1115, %v1218
    %v1220 = vpop.f32.mrb[0].mxu0
    %v1221 = vpop.f32.mrb[0].mxu0
    %v1222 = vadd.f32 %v1118, %v1221
    %v1223 = vpop.f32.mrb[0].mxu0
    %1224 = vmatprep.mubr.bf16.mxu0 0
    %1225 = vmatmul.mubr.bf16.gmra.mrb[0].mxu0 %v1176
    %v1226 = vpop.f32.mrb[0].mxu0
    %v1227 = vadd.f32 %v1123, %v1226
    %v1228 = vpop.f32.mrb[0].mxu0
    %v1229 = vpop.f32.mrb[0].mxu0
    %v1230 = vadd.f32 %v1126, %v1229
    %v1231 = vpop.f32.mrb[0].mxu0
    %1232 = vmatprep.mubr.bf16.mxu0 0
    %1233 = vmatmul.mubr.bf16.gmra.mrb[0].mxu0 %v1179
    %v1234 = vpop.f32.mrb[0].mxu0
    %v1235 = vadd.f32 %v1131, %v1234
    %v1236 = vpop.f32.mrb[0].mxu0
    %v1237 = vpop.f32.mrb[0].mxu0
    %v1238 = vadd.f32 %v1134, %v1237
    %v1239 = vpop.f32.mrb[0].mxu0
    %1240 = vmatprep.mubr.bf16.mxu0 0
    %1241 = vmatmul.mubr.bf16.gmra.mrb[0].mxu0 %v1182
    %v1242 = vpop.f32.mrb[0].mxu0
    %v1243 = vadd.f32 %v1139, %v1242
    %v1244 = vpop.f32.mrb[0].mxu0
    %v1245 = vpop.f32.mrb[0].mxu0
    %v1246 = vadd.f32 %v1142, %v1245
    %v1247 = vpop.f32.mrb[0].mxu0
    %1248 = vdwg.mxu0
    %v1249 = vld [vmem:[%s6] sm:$0x1]
    %v1251 = vlaneseq
    %v1252 = vshrl.u32 %v1251, 7
    %v1253 = vsub.s32 0, %v1252
    %v1254 = vrot.slane %v1249, %v1253
    %v1256 = vadd.f32 %v1219, %v1254
    %v1257 = vadd.f32 %v1222, %v1254
    %v1258 = vadd.f32 %v1227, %v1254
    %v1259 = vadd.f32 %v1230, %v1254
    %v1260 = vadd.f32 %v1235, %v1254
    %v1261 = vadd.f32 %v1238, %v1254
    %v1262 = vadd.f32 %v1243, %v1254
    %v1263 = vadd.f32 %v1246, %v1254
    %v1264 = vmax.f32 %v1256, 0.0
    %v1265 = vmax.f32 %v1257, 0.0
    %v1266 = vmax.f32 %v1258, 0.0
    %v1267 = vmax.f32 %v1259, 0.0
    %v1268 = vmax.f32 %v1260, 0.0
    %v1269 = vmax.f32 %v1261, 0.0
    %v1270 = vmax.f32 %v1262, 0.0
    %v1271 = vmax.f32 %v1263, 0.0
    %v1272 = vpack.c.bf16 %v1265, %v1264
    %v1273 = vpack.c.bf16 %v1267, %v1266
    %v1274 = vpack.c.bf16 %v1269, %v1268
    %v1275 = vpack.c.bf16 %v1271, %v1270
    %v1276 = vld [vmem:[%s7] sm:$0xf]
    %v1277 = vld [vmem:[%s7 + $0x4] sm:$0xf]
    %v1278 = vld [vmem:[%s7 + $0x8] sm:$0xf]
    %v1279 = vld [vmem:[%s7 + $0xc] sm:$0xf]
    %v1280 = vld [vmem:[%s7 + $0x10] sm:$0xf]
    %v1281 = vld [vmem:[%s7 + $0x14] sm:$0xf]
    %v1282 = vld [vmem:[%s7 + $0x18] sm:$0xf]
    %v1283 = vld [vmem:[%s7 + $0x1c] sm:$0xf]
    %v1284 = vld [vmem:[%s7 + $0x20] sm:$0xf]
    %v1285 = vld [vmem:[%s7 + $0x24] sm:$0xf]
    %v1286 = vld [vmem:[%s7 + $0x28] sm:$0xf]
    %v1287 = vld [vmem:[%s7 + $0x2c] sm:$0xf]
    %v1288 = vld [vmem:[%s7 + $0x30] sm:$0xf]
    %v1289 = vld [vmem:[%s7 + $0x34] sm:$0xf]
    %v1290 = vld [vmem:[%s7 + $0x38] sm:$0xf]
    %v1291 = vld [vmem:[%s7 + $0x3c] sm:$0xf]
    %v1292 = vld [vmem:[%s8] sm:$0x1]
    %v1294 = vlaneseq
    %v1295 = vshrl.u32 %v1294, 7
    %v1296 = vsub.s32 0, %v1295
    %v1297 = vrot.slane %v1292, %v1296
    %v1315 = vunpack.c.l.b16 %v1276
    %v1316 = vunpack.c.l.b16 %v1277
    %v1317 = vunpack.c.l.b16 %v1278
    %v1318 = vunpack.c.l.b16 %v1279
    %v1319 = vunpack.c.l.b16 %v1280
    %v1320 = vunpack.c.l.b16 %v1281
    %v1321 = vunpack.c.l.b16 %v1282
    %v1322 = vunpack.c.l.b16 %v1283
    %v1323 = vunpack.c.l.b16 %v1284
    %v1324 = vunpack.c.l.b16 %v1285
    %v1325 = vunpack.c.l.b16 %v1286
    %v1326 = vunpack.c.l.b16 %v1287
    %v1327 = vunpack.c.l.b16 %v1288
    %v1328 = vunpack.c.l.b16 %v1289
    %v1329 = vunpack.c.l.b16 %v1290
    %v1330 = vunpack.c.l.b16 %v1291
    %v1331 = vpack.c.b16 %v1316, %v1315
    %v1332 = vpack.c.b16 %v1318, %v1317
    %v1333 = vpack.c.b16 %v1320, %v1319
    %v1334 = vpack.c.b16 %v1322, %v1321
    %v1335 = vpack.c.b16 %v1324, %v1323
    %v1336 = vpack.c.b16 %v1326, %v1325
    %v1337 = vpack.c.b16 %v1328, %v1327
    %v1338 = vpack.c.b16 %v1330, %v1329
    %1347 = vmatprep.subr.bf16.mxu0 0
    %1348 = vmatpush1.bf16.msra.mxu0 %v1331
    %1349 = vmatprep.subr.bf16.mxu0 0
    %1350 = vmatpush1.bf16.msra.mxu0 %v1332
    %1351 = vmatprep.subr.bf16.mxu0 0
    %1352 = vmatpush1.bf16.msra.mxu0 %v1333
    %1353 = vmatprep.subr.bf16.mxu0 0
    %1354 = vmatpush1.bf16.msra.mxu0 %v1334
    %1355 = vmatprep.subr.bf16.mxu0 0
    %1356 = vmatpush1.bf16.msra.mxu0 %v1335
    %1357 = vmatprep.subr.bf16.mxu0 0
    %1358 = vmatpush1.bf16.msra.mxu0 %v1336
    %1359 = vmatprep.subr.bf16.mxu0 0
    %1360 = vmatpush1.bf16.msra.mxu0 %v1337
    %1361 = vmatprep.subr.bf16.mxu0 0
    %1362 = vmatpush1.bf16.msra.mxu0 %v1338
    %1363 = vmatprep.subr.bf16.mxu0 0
    %1364 = vmatpush1.bf16.msra.mxu0 0
    %1365 = vmatprep.subr.bf16.mxu0 0
    %1366 = vmatpush1.bf16.msra.mxu0 0
    %1367 = vmatprep.subr.bf16.mxu0 0
    %1368 = vmatpush1.bf16.msra.mxu0 0
    %1369 = vmatprep.subr.bf16.mxu0 0
    %1370 = vmatpush1.bf16.msra.mxu0 0
    %1371 = vmatprep.subr.bf16.mxu0 0
    %1372 = vmatpush1.bf16.msra.mxu0 0
    %1373 = vmatprep.subr.bf16.mxu0 0
    %1374 = vmatpush1.bf16.msra.mxu0 0
    %1375 = vmatprep.subr.bf16.mxu0 0
    %1376 = vmatpush1.bf16.msra.mxu0 0
    %1377 = vmatprep.subr.bf16.mxu0 0
    %1378 = vmatpush1.bf16.msra.mxu0 0
    %1379 = vmatprep.mubr.bf16.mxu0 0
    %1380 = vmatmul.mubr.bf16.gmra.mrb[0].mxu0 %v1272
    %v1381 = vpop.f32.mrb[0].mxu0
    %v1382 = vadd.f32 %v1297, %v1381
    %v1383 = vpop.f32.mrb[0].mxu0
    %v1384 = vpop.f32.mrb[0].mxu0
    %v1385 = vadd.f32 %v1297, %v1384
    %v1386 = vpop.f32.mrb[0].mxu0
    %1387 = vmatprep.mubr.bf16.mxu0 0
    %1388 = vmatmul.mubr.bf16.gmra.mrb[0].mxu0 %v1273
    %v1389 = vpop.f32.mrb[0].mxu0
    %v1390 = vadd.f32 %v1297, %v1389
    %v1391 = vpop.f32.mrb[0].mxu0
    %v1392 = vpop.f32.mrb[0].mxu0
    %v1393 = vadd.f32 %v1297, %v1392
    %v1394 = vpop.f32.mrb[0].mxu0
    %1395 = vmatprep.mubr.bf16.mxu0 0
    %1396 = vmatmul.mubr.bf16.gmra.mrb[0].mxu0 %v1274
    %v1397 = vpop.f32.mrb[0].mxu0
    %v1398 = vadd.f32 %v1297, %v1397
    %v1399 = vpop.f32.mrb[0].mxu0
    %v1400 = vpop.f32.mrb[0].mxu0
    %v1401 = vadd.f32 %v1297, %v1400
    %v1402 = vpop.f32.mrb[0].mxu0
    %1403 = vmatprep.mubr.bf16.mxu0 0
    %1404 = vmatmul.mubr.bf16.gmra.mrb[0].mxu0 %v1275
    %v1405 = vpop.f32.mrb[0].mxu0
    %v1406 = vadd.f32 %v1297, %v1405
    %v1407 = vpop.f32.mrb[0].mxu0
    %v1408 = vpop.f32.mrb[0].mxu0
    %v1409 = vadd.f32 %v1297, %v1408
    %v1410 = vpop.f32.mrb[0].mxu0
    %1411 = vdwg.mxu0
    %v1412 = vmax.f32 %v1382, 0.0
    %v1413 = vmax.f32 %v1385, 0.0
    %v1414 = vmax.f32 %v1390, 0.0
    %v1415 = vmax.f32 %v1393, 0.0
    %v1416 = vmax.f32 %v1398, 0.0
    %v1417 = vmax.f32 %v1401, 0.0
    %v1418 = vmax.f32 %v1406, 0.0
    %v1419 = vmax.f32 %v1409, 0.0
    %v1420 = vpack.c.bf16 %v1413, %v1412
    %v1421 = vpack.c.bf16 %v1415, %v1414
    %v1422 = vpack.c.bf16 %v1417, %v1416
    %v1423 = vpack.c.bf16 %v1419, %v1418
    %v1424 = vld [vmem:[%s9] sm:$0xf]
    %v1425 = vld [vmem:[%s9 + $0x4] sm:$0xf]
    %v1426 = vld [vmem:[%s9 + $0x8] sm:$0xf]
    %v1427 = vld [vmem:[%s9 + $0xc] sm:$0xf]
    %v1428 = vld [vmem:[%s9 + $0x10] sm:$0xf]
    %v1429 = vld [vmem:[%s9 + $0x14] sm:$0xf]
    %v1430 = vld [vmem:[%s9 + $0x18] sm:$0xf]
    %v1431 = vld [vmem:[%s9 + $0x1c] sm:$0xf]
    %v1432 = vld [vmem:[%s9 + $0x20] sm:$0xf]
    %v1433 = vld [vmem:[%s9 + $0x24] sm:$0xf]
    %v1434 = vld [vmem:[%s9 + $0x28] sm:$0xf]
    %v1435 = vld [vmem:[%s9 + $0x2c] sm:$0xf]
    %v1436 = vld [vmem:[%s9 + $0x30] sm:$0xf]
    %v1437 = vld [vmem:[%s9 + $0x34] sm:$0xf]
    %v1438 = vld [vmem:[%s9 + $0x38] sm:$0xf]
    %v1439 = vld [vmem:[%s9 + $0x3c] sm:$0xf]
    %v1440 = vld [vmem:[%s10] sm:$0x1]
    %v1442 = vlaneseq
    %v1443 = vshrl.u32 %v1442, 7
    %v1444 = vsub.s32 0, %v1443
    %v1445 = vrot.slane %v1440, %v1444
    %v1463 = vunpack.c.l.b16 %v1424
    %v1464 = vunpack.c.l.b16 %v1425
    %v1465 = vunpack.c.l.b16 %v1426
    %v1466 = vunpack.c.l.b16 %v1427
    %v1467 = vunpack.c.l.b16 %v1428
    %v1468 = vunpack.c.l.b16 %v1429
    %v1469 = vunpack.c.l.b16 %v1430
    %v1470 = vunpack.c.l.b16 %v1431
    %v1471 = vunpack.c.l.b16 %v1432
    %v1472 = vunpack.c.l.b16 %v1433
    %v1473 = vunpack.c.l.b16 %v1434
    %v1474 = vunpack.c.l.b16 %v1435
    %v1475 = vunpack.c.l.b16 %v1436
    %v1476 = vunpack.c.l.b16 %v1437
    %v1477 = vunpack.c.l.b16 %v1438
    %v1478 = vunpack.c.l.b16 %v1439
    %v1479 = vpack.c.b16 %v1464, %v1463
    %v1480 = vpack.c.b16 %v1466, %v1465
    %v1481 = vpack.c.b16 %v1468, %v1467
    %v1482 = vpack.c.b16 %v1470, %v1469
    %v1483 = vpack.c.b16 %v1472, %v1471
    %v1484 = vpack.c.b16 %v1474, %v1473
    %v1485 = vpack.c.b16 %v1476, %v1475
    %v1486 = vpack.c.b16 %v1478, %v1477
    %1495 = vmatprep.subr.bf16.mxu0 0
    %1496 = vmatpush1.bf16.msra.mxu0 %v1479
    %1497 = vmatprep.subr.bf16.mxu0 0
    %1498 = vmatpush1.bf16.msra.mxu0 %v1480
    %1499 = vmatprep.subr.bf16.mxu0 0
    %1500 = vmatpush1.bf16.msra.mxu0 %v1481
    %1501 = vmatprep.subr.bf16.mxu0 0
    %1502 = vmatpush1.bf16.msra.mxu0 %v1482
    %1503 = vmatprep.subr.bf16.mxu0 0
    %1504 = vmatpush1.bf16.msra.mxu0 %v1483
    %1505 = vmatprep.subr.bf16.mxu0 0
    %1506 = vmatpush1.bf16.msra.mxu0 %v1484
    %1507 = vmatprep.subr.bf16.mxu0 0
    %1508 = vmatpush1.bf16.msra.mxu0 %v1485
    %1509 = vmatprep.subr.bf16.mxu0 0
    %1510 = vmatpush1.bf16.msra.mxu0 %v1486
    %1511 = vmatprep.subr.bf16.mxu0 0
    %1512 = vmatpush1.bf16.msra.mxu0 0
    %1513 = vmatprep.subr.bf16.mxu0 0
    %1514 = vmatpush1.bf16.msra.mxu0 0
    %1515 = vmatprep.subr.bf16.mxu0 0
    %1516 = vmatpush1.bf16.msra.mxu0 0
    %1517 = vmatprep.subr.bf16.mxu0 0
    %1518 = vmatpush1.bf16.msra.mxu0 0
    %1519 = vmatprep.subr.bf16.mxu0 0
    %1520 = vmatpush1.bf16.msra.mxu0 0
    %1521 = vmatprep.subr.bf16.mxu0 0
    %1522 = vmatpush1.bf16.msra.mxu0 0
    %1523 = vmatprep.subr.bf16.mxu0 0
    %1524 = vmatpush1.bf16.msra.mxu0 0
    %1525 = vmatprep.subr.bf16.mxu0 0
    %1526 = vmatpush1.bf16.msra.mxu0 0
    %1527 = vmatprep.mubr.bf16.mxu0 0
    %1528 = vmatmul.mubr.bf16.gmra.mrb[0].mxu0 %v1420
    %v1529 = vpop.f32.mrb[0].mxu0
    %v1530 = vadd.f32 %v1445, %v1529
    %v1531 = vpop.f32.mrb[0].mxu0
    %v1532 = vpop.f32.mrb[0].mxu0
    %v1533 = vadd.f32 %v1445, %v1532
    %v1534 = vpop.f32.mrb[0].mxu0
    %1535 = vmatprep.mubr.bf16.mxu0 0
    %1536 = vmatmul.mubr.bf16.gmra.mrb[0].mxu0 %v1421
    %v1537 = vpop.f32.mrb[0].mxu0
    %v1538 = vadd.f32 %v1445, %v1537
    %v1539 = vpop.f32.mrb[0].mxu0
    %v1540 = vpop.f32.mrb[0].mxu0
    %v1541 = vadd.f32 %v1445, %v1540
    %v1542 = vpop.f32.mrb[0].mxu0
    %1543 = vmatprep.mubr.bf16.mxu0 0
    %1544 = vmatmul.mubr.bf16.gmra.mrb[0].mxu0 %v1422
    %v1545 = vpop.f32.mrb[0].mxu0
    %v1546 = vadd.f32 %v1445, %v1545
    %v1547 = vpop.f32.mrb[0].mxu0
    %v1548 = vpop.f32.mrb[0].mxu0
    %v1549 = vadd.f32 %v1445, %v1548
    %v1550 = vpop.f32.mrb[0].mxu0
    %1551 = vmatprep.mubr.bf16.mxu0 0
    %1552 = vmatmul.mubr.bf16.gmra.mrb[0].mxu0 %v1423
    %v1553 = vpop.f32.mrb[0].mxu0
    %v1554 = vadd.f32 %v1445, %v1553
    %v1555 = vpop.f32.mrb[0].mxu0
    %v1556 = vpop.f32.mrb[0].mxu0
    %v1557 = vadd.f32 %v1445, %v1556
    %v1558 = vpop.f32.mrb[0].mxu0
    %1559 = vdwg.mxu0
    %1560 = vst [vmem:[#allocation7] sm:$0xff] %v1530
    %1561 = vst [vmem:[#allocation7 + $0x8] sm:$0xff] %v1533
    %1562 = vst [vmem:[#allocation7 + $0x10] sm:$0xff] %v1538
    %1563 = vst [vmem:[#allocation7 + $0x18] sm:$0xff] %v1541
    %1564 = vst [vmem:[#allocation7 + $0x20] sm:$0xff] %v1546
    %1565 = vst [vmem:[#allocation7 + $0x28] sm:$0xff] %v1549
    %1566 = vst [vmem:[#allocation7 + $0x30] sm:$0xff] %v1554
    %1567 = vst [vmem:[#allocation7 + $0x38] sm:$0xff] %v1557
    // Predicated region
    $region54: #{tpu_custom_call.1} parent=1 // pred_check
      _
    $region55: #{tpu_custom_call.1} parent=1 // pred_check_branch
      %1569 = sbr.rel (0) target = $region57
    $region56: #{tpu_custom_call.1} parent=1 // pred_region
      %s1571 = ssub.s32 1024, 1024
      %1572 = vsyncadd [#allocation4], %s1571
      %s1573 = sshll.u32 [#allocation7], 4
      %s1574 = int_to_ptr.vmem [resolvable:$true] %s1573
      %1579 = dma.vmem_to_hbm [thread:$0]  %s1574, 1024, %s11, [#allocation4], 128, 128, 8
    $region57: #{tpu_custom_call.1} parent=1 // pred_fallthru
      _
    // Predicated region
    $region58: #{tpu_custom_call.1} parent=1 // pred_check
      _
    $region59: #{tpu_custom_call.1} parent=1 // pred_check_branch
      %1581 = sbr.rel (0) target = $region61
    $region60: #{tpu_custom_call.1} parent=1 // pred_region
      %1582 = dma.done [#allocation4], 1024
    $region61: #{tpu_custom_call.1} parent=1 // pred_fallthru
      _
    %1583 = vsyncpa [#allocation3], 1
    %1584 = vsyncpa [#allocation6], 1
    %1585 = vsyncpa [#allocation4], 1

</llo_original>
